<compile_context>
chip_gen: v6e
topology: v6e:2x2x1
jax: 0.10.0
libtpu: 0.0.40
codegen_flags: <defaults>
</compile_context>

<pallas_src>
import numpy as np
import jax
import jax.numpy as jnp
from jax import lax
from jax.experimental import pallas as pl
from jax.experimental.pallas import tpu as pltpu


_INF_BITS = 0x7F800000   # +inf bit pattern: sentinel for ignored / padded pixels
_ONE_BITS = 0x3F800000   # bit pattern of 1.0f


def _float_bits(x):
    """Bit pattern of a non-negative float32 as a python int."""
    return int(np.asarray(x, np.float32).view(np.int32))


def _make_prob_kernel(ignore_label, thresh_bits):
    def prob_kernel(pred_ref, tgt_ref, ce_ref, bits_ref, stats_ref):
        logits = pred_ref[...]                        # (c, Rt, W) f32
        t = tgt_ref[...]                              # (Rt, W) i32
        valid = t != ignore_label
        t0 = jnp.where(valid, t, 0)

        # One-hot gather of the ground-truth logit (elementwise across c slabs).
        ch = lax.broadcasted_iota(jnp.int32, logits.shape, 0)
        onehot = (ch == t0[None, :, :]).astype(jnp.float32)
        gt_logit = jnp.sum(logits * onehot, axis=0)   # (Rt, W)

        # Numerically stable log-sum-exp over channels.
        m = jnp.max(logits, axis=0)
        lse = m + jnp.log(jnp.sum(jnp.exp(logits - m[None, :, :]), axis=0))
        ce = lse - gt_logit                           # -log p_gt
        # Clamp so valid-pixel bit patterns never exceed the 1.0f upper bound.
        prob = jnp.minimum(jnp.exp(gt_logit - lse), 1.0)

        bits = jnp.where(valid, pltpu.bitcast(prob, jnp.int32),
                         jnp.int32(_INF_BITS))
        ce_ref[...] = ce                              # full-vreg lane-dense store
        bits_ref[...] = bits

        # Per-tile partial stats, row-reduced only (lanes stay dense); the tiny
        # cross-lane reduce happens once in the wrapper on the stats array.
        le_t = (bits <= jnp.int32(thresh_bits)).astype(jnp.float32)
        valid_f = valid.astype(jnp.float32)
        stats_ref[:, 0:1, :] = jnp.sum(le_t, axis=0, keepdims=True)[None]
        stats_ref[:, 1:2, :] = jnp.sum(le_t * ce, axis=0, keepdims=True)[None]
        stats_ref[:, 2:3, :] = jnp.sum(valid_f, axis=0, keepdims=True)[None]
        stats_ref[:, 3:4, :] = jnp.sum(valid_f * ce, axis=0, keepdims=True)[None]
    return prob_kernel


def _make_kth_kernel(k, lo0, hi0, iters):
    """Exact k-th smallest prob (as bit pattern) in (thresh, 1] + kept mean."""
    def kth_kernel(bits_ref, ce_ref, loss_ref):
        bits = bits_ref[...]                          # (R, W) i32 bit patterns
        ce = ce_ref[...]                              # (R, W) f32

        def body(_, carry):
            lo, hi = carry                            # answer in [lo, hi]
            mid = lo + (hi - lo) // 2
            cnt = jnp.sum((bits <= mid).astype(jnp.int32))
            found = cnt >= k
            return (jnp.where(found, lo, mid + 1),
                    jnp.where(found, mid, hi))

        _, kth_bits = lax.fori_loop(0, iters, body,
                                    (jnp.int32(lo0), jnp.int32(hi0)))

        # threshold = kth (> thresh by construction on this path); invalid and
        # padded pixels carry +inf so they are never kept.
        kept = bits <= kth_bits
        loss_sum = jnp.sum(jnp.where(kept, ce, 0.0))
        cnt_kept = jnp.sum(kept.astype(jnp.float32))
        loss_ref[0, 0] = loss_sum / cnt_kept
    return kth_kernel


def prob_ohem_cross_entropy(pred, target, *, ignore_label, thresh=0.6,
                            min_kept=256, lane_w=512, rows_per_tile=16):
    """pred: (b, c, h, w) float32 logits; target: (b, h, w) int labels.

    Returns the scalar OHEM cross-entropy loss (mean over kept pixels).
    """
    b, c, h, w = pred.shape
    n = b * h * w
    px_per_tile = rows_per_tile * lane_w                 # 8192 pixels / grid step
    n_pad = px_per_tile * ((n + px_per_tile - 1) // px_per_tile)
    r_total = n_pad // lane_w
    num_tiles = r_total // rows_per_tile

    thresh_bits = _float_bits(thresh)
    k = min(n, int(min_kept))

    # Layout glue: channel-major, pixels dense in a 2-D (rows, 512-lane) grid.
    # Pixel flattening order (b, h, w) matches target.view(-1) in the module.
    pred_cn = jnp.transpose(pred, (1, 0, 2, 3)).reshape(c, n).astype(jnp.float32)
    tgt = target.reshape(n).astype(jnp.int32)
    if n_pad != n:
        pred_cn = jnp.pad(pred_cn, ((0, 0), (0, n_pad - n)))
        tgt = jnp.pad(tgt, (0, n_pad - n), constant_values=ignore_label)
    pred_cn = pred_cn.reshape(c, r_total, lane_w)
    tgt = tgt.reshape(r_total, lane_w)

    # ---------------- pass 1: CE, prob bit patterns, per-tile stats ----------
    ce, bits, stats = pl.pallas_call(
        _make_prob_kernel(ignore_label, thresh_bits),
        out_shape=(
            jax.ShapeDtypeStruct((r_total, lane_w), jnp.float32),
            jax.ShapeDtypeStruct((r_total, lane_w), jnp.int32),
            jax.ShapeDtypeStruct((num_tiles, 4, lane_w), jnp.float32),
        ),
        grid=(num_tiles,),
        in_specs=[
            pl.BlockSpec((c, rows_per_tile, lane_w), lambda i: (0, i, 0)),
            pl.BlockSpec((rows_per_tile, lane_w), lambda i: (i, 0)),
        ],
        out_specs=(
            pl.BlockSpec((rows_per_tile, lane_w), lambda i: (i, 0)),
            pl.BlockSpec((rows_per_tile, lane_w), lambda i: (i, 0)),
            pl.BlockSpec((1, 4, lane_w), lambda i: (i, 0, 0)),
        ),
        compiler_params=pltpu.CompilerParams(
            dimension_semantics=("parallel",)),
    )(pred_cn, tgt)

    # Tiny reduction of the per-tile stats (4 * num_tiles * 512 floats).
    totals = jnp.sum(stats, axis=(0, 2))                  # (4,)
    cnt_le_thresh = totals[0]
    sum_ce_le_thresh = totals[1]
    num_valid = totals[2]
    sum_ce_valid = totals[3]

    do_ohem = (num_valid >= jnp.float32(min_kept)) & (num_valid > 0)
    # Early-out: if at least k probs are <= thresh, threshold == thresh exactly.
    need_kth = do_ohem & (cnt_le_thresh < jnp.float32(k))
    common_loss = jnp.where(do_ohem,
                            sum_ce_le_thresh / cnt_le_thresh,
                            sum_ce_valid / num_valid)      # NaN iff num_valid==0

    # Rare path: exact k-th order statistic via bit-pattern bisection.
    lo0 = min(thresh_bits + 1, _ONE_BITS)
    span = max(1, _ONE_BITS - lo0 + 1)
    iters = max(1, (span - 1).bit_length())
    vmem_limit = int(min(max(4 * n_pad * 4, 32 << 20), 64 << 20))

    def rare_path():
        out = pl.pallas_call(
            _make_kth_kernel(k, lo0, _ONE_BITS, iters),
            out_shape=jax.ShapeDtypeStruct((1, 1), jnp.float32),
            in_specs=[
                pl.BlockSpec(memory_space=pltpu.MemorySpace.VMEM),
                pl.BlockSpec(memory_space=pltpu.MemorySpace.VMEM),
            ],
            out_specs=pl.BlockSpec(memory_space=pltpu.MemorySpace.SMEM),
            compiler_params=pltpu.CompilerParams(
                vmem_limit_bytes=vmem_limit),
        )(bits, ce)
        return out[0, 0]

    # TODO(synk): tile the rare exact-kth pass (per-tile count accumulation per
    # bisection step) for production-resolution inputs on v7x, where whole-array
    # VMEM residency of bits+ce would not fit.
    return lax.cond(need_kth, rare_path, lambda: common_loss)


def prob_ohem_cross_entropy_reference(pred, target, *, ignore_label,
                                      thresh=0.6, min_kept=256):
    """Plain-JAX reference mirroring the PyTorch module for correctness checks."""
    b, c, h, w = pred.shape
    n = b * h * w
    logits = jnp.transpose(pred, (1, 0, 2, 3)).reshape(c, n)
    tgt = target.reshape(n).astype(jnp.int32)
    valid = tgt != ignore_label
    t0 = jnp.where(valid, tgt, 0)
    num_valid = jnp.sum(valid.astype(jnp.int32))

    m = jnp.max(logits, axis=0)
    lse = m + jnp.log(jnp.sum(jnp.exp(logits - m), axis=0))
    gt_logit = logits[t0, jnp.arange(n)]
    ce = lse - gt_logit
    mask_prob = jnp.where(valid, jnp.exp(gt_logit - lse), 1.0)

    k = min(n, int(min_kept))
    kth = jnp.sort(mask_prob)[k - 1]
    threshold = jnp.where(kth > thresh, kth, jnp.float32(thresh))
    kept_ohem = valid & (mask_prob <= threshold)
    do_ohem = (num_valid >= min_kept) & (num_valid > 0)
    kept = jnp.where(do_ohem, kept_ohem, valid).astype(jnp.float32)
    return jnp.sum(ce * kept) / jnp.sum(kept)


if __name__ == "__main__":
    # Module config (defaults): thresh=0.6, min_kept=256; 19 classes (Cityscapes).
    b, c, h, w = 2, 19, 16, 16
    ignore_label = 255
    min_kept = 256

    key = jax.random.PRNGKey(0)
    k_pred, k_tgt, k_ign = jax.random.split(key, 3)
    pred = 2.0 * jax.random.normal(k_pred, (b, c, h, w), dtype=jnp.float32)
    target = jax.random.randint(k_tgt, (b, h, w), 0, c, dtype=jnp.int32)
    # ~10% ignored pixels; num_valid (~460) stays >= min_kept so OHEM runs.
    target = jnp.where(jax.random.uniform(k_ign, (b, h, w)) < 0.1,
                       jnp.int32(ignore_label), target)

    # thresh=0.6 exercises the common early-out path (threshold == thresh);
    # thresh=0.0 forces the rare exact-kth bisection kernel.
    for thresh in (0.6, 0.0):
        loss = prob_ohem_cross_entropy(pred, target, ignore_label=ignore_label,
                                       thresh=thresh, min_kept=min_kept)
        loss = jax.block_until_ready(loss)
        ref = prob_ohem_cross_entropy_reference(
            pred, target, ignore_label=ignore_label, thresh=thresh,
            min_kept=min_kept)

        assert loss.shape == ()
        assert bool(jnp.isfinite(loss))
        tol = 1e-3 * max(1.0, abs(float(ref)))
        assert abs(float(loss) - float(ref)) < tol, (thresh, float(loss), float(ref))

    print("KERNEL_OK")
</pallas_src>

<mosaic_0001>
module attributes {stable_mosaic.version = 11 : i64} {
  func.func @prob_kernel(%arg0: i32, %arg1: memref<19x16x512xf32, #tpu.memory_space<vmem>>, %arg2: memref<16x512xi32, #tpu.memory_space<vmem>>, %arg3: memref<16x512xf32, #tpu.memory_space<vmem>>, %arg4: memref<16x512xi32, #tpu.memory_space<vmem>>, %arg5: memref<1x4x512xf32, #tpu.memory_space<vmem>>) attributes {dimension_semantics = [#tpu.dimension_semantics<parallel>], iteration_bounds = array<i64: 1>, scalar_prefetch = 0 : i64, scratch_operands = 0 : i64, tpu.core_type = #tpu.core_type<tc>, window_params = [{transform_indices = @transform_0, window_bounds = array<i64: 19, 16, 512>}, {transform_indices = @transform_1, window_bounds = array<i64: 16, 512>}, {transform_indices = @transform_2, window_bounds = array<i64: 16, 512>}, {transform_indices = @transform_3, window_bounds = array<i64: 16, 512>}, {transform_indices = @transform_4, window_bounds = array<i64: 1, 4, 512>}]} {
    %c0 = arith.constant 0 : index
    %c0_0 = arith.constant 0 : index
    %c0_1 = arith.constant 0 : index
    %0 = vector.load %arg1[%c0, %c0_0, %c0_1] : memref<19x16x512xf32, #tpu.memory_space<vmem>>, vector<19x16x512xf32>
    %c0_2 = arith.constant 0 : index
    %c0_3 = arith.constant 0 : index
    %1 = vector.load %arg2[%c0_2, %c0_3] : memref<16x512xi32, #tpu.memory_space<vmem>>, vector<16x512xi32>
    %c255_i32 = arith.constant 255 : i32
    %2 = vector.broadcast %c255_i32 : i32 to vector<16x512xi32>
    %3 = arith.cmpi ne, %1, %2 : vector<16x512xi32>
    %c0_i32 = arith.constant 0 : i32
    %4 = vector.broadcast %c0_i32 : i32 to vector<16x512xi32>
    %5 = arith.select %3, %1, %4 : vector<16x512xi1>, vector<16x512xi32>
    %6 = tpu.iota {dimensions = array<i32: 0>} : vector<19x16x512xi32>
    %7 = vector.shape_cast %5 : vector<16x512xi32> to vector<1x16x512xi32>
    %8 = vector.broadcast %7 : vector<1x16x512xi32> to vector<19x16x512xi32>
    %9 = arith.cmpi eq, %6, %8 : vector<19x16x512xi32>
    %10 = arith.extui %9 : vector<19x16x512xi1> to vector<19x16x512xi32>
    %11 = arith.sitofp %10 : vector<19x16x512xi32> to vector<19x16x512xf32>
    %12 = arith.mulf %0, %11 : vector<19x16x512xf32>
    %cst = arith.constant dense<0.000000e+00> : vector<16x512xf32>
    %13 = vector.multi_reduction <add>, %12, %cst [0] : vector<19x16x512xf32> to vector<16x512xf32>
    %cst_4 = arith.constant dense<0xFF800000> : vector<16x512xf32>
    %14 = vector.multi_reduction <maximumf>, %0, %cst_4 [0] : vector<19x16x512xf32> to vector<16x512xf32>
    %15 = vector.shape_cast %14 : vector<16x512xf32> to vector<1x16x512xf32>
    %16 = vector.broadcast %15 : vector<1x16x512xf32> to vector<19x16x512xf32>
    %17 = arith.subf %0, %16 : vector<19x16x512xf32>
    %18 = math.exp %17 : vector<19x16x512xf32>
    %cst_5 = arith.constant dense<0.000000e+00> : vector<16x512xf32>
    %19 = vector.multi_reduction <add>, %18, %cst_5 [0] : vector<19x16x512xf32> to vector<16x512xf32>
    %20 = math.log %19 : vector<16x512xf32>
    %21 = arith.addf %14, %20 : vector<16x512xf32>
    %22 = arith.subf %21, %13 : vector<16x512xf32>
    %23 = arith.subf %13, %21 : vector<16x512xf32>
    %24 = math.exp %23 : vector<16x512xf32>
    %cst_6 = arith.constant 1.000000e+00 : f32
    %25 = vector.broadcast %cst_6 : f32 to vector<16x512xf32>
    %26 = arith.minimumf %24, %25 : vector<16x512xf32>
    %27 = tpu.bitcast %26 : vector<16x512xf32> -> vector<16x512xi32>
    %c2139095040_i32 = arith.constant 2139095040 : i32
    %28 = vector.broadcast %c2139095040_i32 : i32 to vector<16x512xi32>
    %29 = arith.select %3, %27, %28 : vector<16x512xi1>, vector<16x512xi32>
    %c0_7 = arith.constant 0 : index
    %c0_8 = arith.constant 0 : index
    %30 = vector.load %arg3[%c0_7, %c0_8] : memref<16x512xf32, #tpu.memory_space<vmem>>, vector<16x512xf32>
    tpu.vector_store %arg3[%c0_7, %c0_8], %22 {strides = array<i32>} : memref<16x512xf32, #tpu.memory_space<vmem>>, vector<16x512xf32>,
    %c0_9 = arith.constant 0 : index
    %c0_10 = arith.constant 0 : index
    %31 = vector.load %arg4[%c0_9, %c0_10] : memref<16x512xi32, #tpu.memory_space<vmem>>, vector<16x512xi32>
    tpu.vector_store %arg4[%c0_9, %c0_10], %29 {strides = array<i32>} : memref<16x512xi32, #tpu.memory_space<vmem>>, vector<16x512xi32>,
    %c1058642330_i32 = arith.constant 1058642330 : i32
    %32 = vector.broadcast %c1058642330_i32 : i32 to vector<16x512xi32>
    %33 = arith.cmpi sle, %29, %32 : vector<16x512xi32>
    %34 = arith.extui %33 : vector<16x512xi1> to vector<16x512xi32>
    %35 = arith.sitofp %34 : vector<16x512xi32> to vector<16x512xf32>
    %36 = arith.extui %3 : vector<16x512xi1> to vector<16x512xi32>
    %37 = arith.sitofp %36 : vector<16x512xi32> to vector<16x512xf32>
    %cst_11 = arith.constant dense<0.000000e+00> : vector<512xf32>
    %38 = vector.multi_reduction <add>, %35, %cst_11 [0] : vector<16x512xf32> to vector<512xf32>
    %39 = vector.shape_cast %38 : vector<512xf32> to vector<1x512xf32>
    %40 = vector.shape_cast %39 : vector<1x512xf32> to vector<1x1x512xf32>
    %c0_12 = arith.constant 0 : index
    %c0_13 = arith.constant 0 : index
    %c0_14 = arith.constant 0 : index
    %41 = vector.load %arg5[%c0_12, %c0_13, %c0_14] : memref<1x4x512xf32, #tpu.memory_space<vmem>>, vector<1x1x512xf32>
    tpu.vector_store %arg5[%c0_12, %c0_13, %c0_14], %40 {strides = array<i32>} : memref<1x4x512xf32, #tpu.memory_space<vmem>>, vector<1x1x512xf32>,
    %42 = arith.mulf %35, %22 : vector<16x512xf32>
    %cst_15 = arith.constant dense<0.000000e+00> : vector<512xf32>
    %43 = vector.multi_reduction <add>, %42, %cst_15 [0] : vector<16x512xf32> to vector<512xf32>
    %44 = vector.shape_cast %43 : vector<512xf32> to vector<1x512xf32>
    %45 = vector.shape_cast %44 : vector<1x512xf32> to vector<1x1x512xf32>
    %c0_16 = arith.constant 0 : index
    %c1 = arith.constant 1 : index
    %c0_17 = arith.constant 0 : index
    %46 = vector.load %arg5[%c0_16, %c1, %c0_17] : memref<1x4x512xf32, #tpu.memory_space<vmem>>, vector<1x1x512xf32>
    tpu.vector_store %arg5[%c0_16, %c1, %c0_17], %45 {strides = array<i32>} : memref<1x4x512xf32, #tpu.memory_space<vmem>>, vector<1x1x512xf32>,
    %cst_18 = arith.constant dense<0.000000e+00> : vector<512xf32>
    %47 = vector.multi_reduction <add>, %37, %cst_18 [0] : vector<16x512xf32> to vector<512xf32>
    %48 = vector.shape_cast %47 : vector<512xf32> to vector<1x512xf32>
    %49 = vector.shape_cast %48 : vector<1x512xf32> to vector<1x1x512xf32>
    %c0_19 = arith.constant 0 : index
    %c2 = arith.constant 2 : index
    %c0_20 = arith.constant 0 : index
    %50 = vector.load %arg5[%c0_19, %c2, %c0_20] : memref<1x4x512xf32, #tpu.memory_space<vmem>>, vector<1x1x512xf32>
    tpu.vector_store %arg5[%c0_19, %c2, %c0_20], %49 {strides = array<i32>} : memref<1x4x512xf32, #tpu.memory_space<vmem>>, vector<1x1x512xf32>,
    %51 = arith.mulf %37, %22 : vector<16x512xf32>
    %cst_21 = arith.constant dense<0.000000e+00> : vector<512xf32>
    %52 = vector.multi_reduction <add>, %51, %cst_21 [0] : vector<16x512xf32> to vector<512xf32>
    %53 = vector.shape_cast %52 : vector<512xf32> to vector<1x512xf32>
    %54 = vector.shape_cast %53 : vector<1x512xf32> to vector<1x1x512xf32>
    %c0_22 = arith.constant 0 : index
    %c3 = arith.constant 3 : index
    %c0_23 = arith.constant 0 : index
    %55 = vector.load %arg5[%c0_22, %c3, %c0_23] : memref<1x4x512xf32, #tpu.memory_space<vmem>>, vector<1x1x512xf32>
    tpu.vector_store %arg5[%c0_22, %c3, %c0_23], %54 {strides = array<i32>} : memref<1x4x512xf32, #tpu.memory_space<vmem>>, vector<1x1x512xf32>,
    return
  }
  func.func @transform_0(%arg0: i32) -> (i32, i32, i32) {
    %c0_i32 = arith.constant 0 : i32
    %c0_i32_0 = arith.constant 0 : i32
    %c0_i32_1 = arith.constant 0 : i32
    return %c0_i32, %arg0, %c0_i32_0 : i32, i32, i32
  }
  func.func @transform_1(%arg0: i32) -> (i32, i32) {
    %c0_i32 = arith.constant 0 : i32
    %c0_i32_0 = arith.constant 0 : i32
    return %arg0, %c0_i32 : i32, i32
  }
  func.func @transform_2(%arg0: i32) -> (i32, i32) {
    %c0_i32 = arith.constant 0 : i32
    %c0_i32_0 = arith.constant 0 : i32
    return %arg0, %c0_i32 : i32, i32
  }
  func.func @transform_3(%arg0: i32) -> (i32, i32) {
    %c0_i32 = arith.constant 0 : i32
    %c0_i32_0 = arith.constant 0 : i32
    return %arg0, %c0_i32 : i32, i32
  }
  func.func @transform_4(%arg0: i32) -> (i32, i32, i32) {
    %c0_i32 = arith.constant 0 : i32
    %c0_i32_0 = arith.constant 0 : i32
    %c0_i32_1 = arith.constant 0 : i32
    return %arg0, %c0_i32, %c0_i32_0 : i32, i32, i32
  }
}

</mosaic_0001>

<llo_original>
// kernel: tpu_custom_call.1
$region0: #{tpu_custom_call.1}
  #allocation0 [shape = 'u32[]', space=smem, size = 0x4, offset = 0x4, fixed_abs, tag = 'smem constant byte address 0x4 - core index']
  #allocation1 [shape = 'u32[144,128]{1,0:T(1,128)}', space=vmem, size = 0x12000, scoped, tag = 'internal scratch']
  %s0 = inlined_call_operand.hbm [shape: f32[19,16,512], index: 0, kind: input, shape index: {}]
  %s1 = inlined_call_operand.hbm [shape: s32[16,512], index: 1, kind: input, shape index: {}]
  %s2 = inlined_call_operand.hbm [shape: f32[16,512], index: 2, kind: output, shape index: {0}]
  %s3 = inlined_call_operand.hbm [shape: s32[16,512], index: 3, kind: output, shape index: {1}]
  %s4 = inlined_call_operand.hbm [shape: f32[1,4,512], index: 4, kind: output, shape index: {2}]
  %5 = xla_tuple %s2, %s3, %s4
  %s6 = sld [smem:[#allocation0]]
  $region42: #{tpu_custom_call.1} parent=0
    _
  %s8 = ssub.s32 1, %s6
  %s9 = scalar_select 0, %s8, %s6
  $region1: #{tpu_custom_call.1} parent=0
    #allocation2 [shape = 'u8[622592]{0}', space=vmem, size = 0x98000, scoped, tag = 'input window, operand 0, single buffered']
    #allocation3 [shape = 's32[1]{0}', space=sflag, size = 0x4, scoped, tag = 'scoped memory for tpu_custom_call.1']
    #allocation4 [shape = 's32[1]{0}', space=sflag, size = 0x4, scoped, tag = 'scoped memory for tpu_custom_call.1']
    #allocation5 [shape = 'u8[32768]{0}', space=vmem, size = 0x8000, scoped, tag = 'input window, operand 1, single buffered']
    #allocation6 [shape = 's32[1]{0}', space=sflag, size = 0x4, scoped, tag = 'scoped memory for tpu_custom_call.1']
    #allocation7 [shape = 'u8[32768]{0}', space=vmem, size = 0x8000, scoped, tag = 'output window, operand 0, single buffered']
    #allocation8 [shape = 'u8[32768]{0}', space=vmem, size = 0x8000, scoped, tag = 'output window, operand 1, single buffered']
    #allocation9 [shape = 's32[1]{0}', space=sflag, size = 0x4, scoped, tag = 'scoped memory for tpu_custom_call.1']
    #allocation10 [shape = 'u8[8192]{0}', space=vmem, size = 0x2000, scoped, tag = 'output window, operand 2, single buffered']
    %10 = vsyncpa [#allocation3], 0
    %11 = vsyncpa [#allocation6], 0
    %12 = vsyncpa [#allocation4], 0
    %13 = vsyncpa [#allocation9], 0
    // Predicated region
    $region2: #{tpu_custom_call.1} parent=1 // pred_check
      _
    $region3: #{tpu_custom_call.1} parent=1 // pred_check_branch
      %15 = sbr.rel (0) target = $region5
    $region4: #{tpu_custom_call.1} parent=1 // pred_region
      %s17 = ssub.s32 19456, 19456
      %18 = vsyncadd [#allocation3], %s17
      %s19 = sshll.u32 [#allocation2], 4
      %s20 = int_to_ptr.vmem [resolvable:$true] %s19
      %25 = dma.hbm_to_vmem [thread:$0]  %s0, 19456, %s20, [#allocation3], 512, 512, 32
    $region5: #{tpu_custom_call.1} parent=1 // pred_fallthru
      _
    // Predicated region
    $region6: #{tpu_custom_call.1} parent=1 // pred_check
      _
    $region7: #{tpu_custom_call.1} parent=1 // pred_check_branch
      %27 = sbr.rel (0) target = $region9
    $region8: #{tpu_custom_call.1} parent=1 // pred_region
      %s29 = ssub.s32 1024, 1024
      %30 = vsyncadd [#allocation6], %s29
      %s31 = sshll.u32 [#allocation5], 4
      %s32 = int_to_ptr.vmem [resolvable:$true] %s31
      %37 = dma.hbm_to_vmem [thread:$0]  %s1, 1024, %s32, [#allocation6], 512, 512, 32
    $region9: #{tpu_custom_call.1} parent=1 // pred_fallthru
      _
    // Predicated region
    $region10: #{tpu_custom_call.1} parent=1 // pred_check
      _
    $region11: #{tpu_custom_call.1} parent=1 // pred_check_branch
      %39 = sbr.rel (0) target = $region13
    $region12: #{tpu_custom_call.1} parent=1 // pred_region
      %40 = dma.done [#allocation3], 19456
    $region13: #{tpu_custom_call.1} parent=1 // pred_fallthru
      _
    // Predicated region
    $region14: #{tpu_custom_call.1} parent=1 // pred_check
      _
    $region15: #{tpu_custom_call.1} parent=1 // pred_check_branch
      %42 = sbr.rel (0) target = $region17
    $region16: #{tpu_custom_call.1} parent=1 // pred_region
      %43 = dma.done [#allocation6], 1024
    $region17: #{tpu_custom_call.1} parent=1 // pred_fallthru
      _
    %v44 = vld [vmem:[#allocation2] sm:$0xff]
    %v45 = vld [vmem:[#allocation2 + $0x8] sm:$0xff]
    %v46 = vld [vmem:[#allocation2 + $0x10] sm:$0xff]
    %v47 = vld [vmem:[#allocation2 + $0x18] sm:$0xff]
    %v48 = vld [vmem:[#allocation2 + $0x20] sm:$0xff]
    %v49 = vld [vmem:[#allocation2 + $0x28] sm:$0xff]
    %v50 = vld [vmem:[#allocation2 + $0x30] sm:$0xff]
    %v51 = vld [vmem:[#allocation2 + $0x38] sm:$0xff]
    %v52 = vld [vmem:[#allocation2 + $0x40] sm:$0xff]
    %v53 = vld [vmem:[#allocation2 + $0x48] sm:$0xff]
    %v54 = vld [vmem:[#allocation2 + $0x50] sm:$0xff]
    %v55 = vld [vmem:[#allocation2 + $0x58] sm:$0xff]
    %v56 = vld [vmem:[#allocation2 + $0x60] sm:$0xff]
    %v57 = vld [vmem:[#allocation2 + $0x68] sm:$0xff]
    %v58 = vld [vmem:[#allocation2 + $0x70] sm:$0xff]
    %v59 = vld [vmem:[#allocation2 + $0x78] sm:$0xff]
    %v60 = vld [vmem:[#allocation2 + $0x80] sm:$0xff]
    %v61 = vld [vmem:[#allocation2 + $0x88] sm:$0xff]
    %v62 = vld [vmem:[#allocation2 + $0x90] sm:$0xff]
    %v63 = vld [vmem:[#allocation2 + $0x98] sm:$0xff]
    %v64 = vld [vmem:[#allocation2 + $0xa0] sm:$0xff]
    %v65 = vld [vmem:[#allocation2 + $0xa8] sm:$0xff]
    %v66 = vld [vmem:[#allocation2 + $0xb0] sm:$0xff]
    %v67 = vld [vmem:[#allocation2 + $0xb8] sm:$0xff]
    %v68 = vld [vmem:[#allocation2 + $0xc0] sm:$0xff]
    %v69 = vld [vmem:[#allocation2 + $0xc8] sm:$0xff]
    %v70 = vld [vmem:[#allocation2 + $0xd0] sm:$0xff]
    %v71 = vld [vmem:[#allocation2 + $0xd8] sm:$0xff]
    %v72 = vld [vmem:[#allocation2 + $0xe0] sm:$0xff]
    %v73 = vld [vmem:[#allocation2 + $0xe8] sm:$0xff]
    %v74 = vld [vmem:[#allocation2 + $0xf0] sm:$0xff]
    %v75 = vld [vmem:[#allocation2 + $0xf8] sm:$0xff]
    %v76 = vld [vmem:[#allocation2 + $0x100] sm:$0xff]
    %v77 = vld [vmem:[#allocation2 + $0x108] sm:$0xff]
    %v78 = vld [vmem:[#allocation2 + $0x110] sm:$0xff]
    %v79 = vld [vmem:[#allocation2 + $0x118] sm:$0xff]
    %v80 = vld [vmem:[#allocation2 + $0x120] sm:$0xff]
    %v81 = vld [vmem:[#allocation2 + $0x128] sm:$0xff]
    %v82 = vld [vmem:[#allocation2 + $0x130] sm:$0xff]
    %v83 = vld [vmem:[#allocation2 + $0x138] sm:$0xff]
    %v84 = vld [vmem:[#allocation2 + $0x140] sm:$0xff]
    %v85 = vld [vmem:[#allocation2 + $0x148] sm:$0xff]
    %v86 = vld [vmem:[#allocation2 + $0x150] sm:$0xff]
    %v87 = vld [vmem:[#allocation2 + $0x158] sm:$0xff]
    %v88 = vld [vmem:[#allocation2 + $0x160] sm:$0xff]
    %v89 = vld [vmem:[#allocation2 + $0x168] sm:$0xff]
    %v90 = vld [vmem:[#allocation2 + $0x170] sm:$0xff]
    %v91 = vld [vmem:[#allocation2 + $0x178] sm:$0xff]
    %v92 = vld [vmem:[#allocation2 + $0x180] sm:$0xff]
    %v93 = vld [vmem:[#allocation2 + $0x188] sm:$0xff]
    %v94 = vld [vmem:[#allocation2 + $0x190] sm:$0xff]
    %v95 = vld [vmem:[#allocation2 + $0x198] sm:$0xff]
    %v96 = vld [vmem:[#allocation2 + $0x1a0] sm:$0xff]
    %v97 = vld [vmem:[#allocation2 + $0x1a8] sm:$0xff]
    %v98 = vld [vmem:[#allocation2 + $0x1b0] sm:$0xff]
    %v99 = vld [vmem:[#allocation2 + $0x1b8] sm:$0xff]
    %v100 = vld [vmem:[#allocation2 + $0x1c0] sm:$0xff]
    %v101 = vld [vmem:[#allocation2 + $0x1c8] sm:$0xff]
    %v102 = vld [vmem:[#allocation2 + $0x1d0] sm:$0xff]
    %v103 = vld [vmem:[#allocation2 + $0x1d8] sm:$0xff]
    %v104 = vld [vmem:[#allocation2 + $0x1e0] sm:$0xff]
    %v105 = vld [vmem:[#allocation2 + $0x1e8] sm:$0xff]
    %v106 = vld [vmem:[#allocation2 + $0x1f0] sm:$0xff]
    %v107 = vld [vmem:[#allocation2 + $0x1f8] sm:$0xff]
    %v108 = vld [vmem:[#allocation2 + $0x200] sm:$0xff]
    %v109 = vld [vmem:[#allocation2 + $0x208] sm:$0xff]
    %v110 = vld [vmem:[#allocation2 + $0x210] sm:$0xff]
    %v111 = vld [vmem:[#allocation2 + $0x218] sm:$0xff]
    %v112 = vld [vmem:[#allocation2 + $0x220] sm:$0xff]
    %v113 = vld [vmem:[#allocation2 + $0x228] sm:$0xff]
    %v114 = vld [vmem:[#allocation2 + $0x230] sm:$0xff]
    %v115 = vld [vmem:[#allocation2 + $0x238] sm:$0xff]
    %v116 = vld [vmem:[#allocation2 + $0x240] sm:$0xff]
    %v117 = vld [vmem:[#allocation2 + $0x248] sm:$0xff]
    %v118 = vld [vmem:[#allocation2 + $0x250] sm:$0xff]
    %v119 = vld [vmem:[#allocation2 + $0x258] sm:$0xff]
    %v120 = vld [vmem:[#allocation2 + $0x260] sm:$0xff]
    %v121 = vld [vmem:[#allocation2 + $0x268] sm:$0xff]
    %v122 = vld [vmem:[#allocation2 + $0x270] sm:$0xff]
    %v123 = vld [vmem:[#allocation2 + $0x278] sm:$0xff]
    %v124 = vld [vmem:[#allocation2 + $0x280] sm:$0xff]
    %v125 = vld [vmem:[#allocation2 + $0x288] sm:$0xff]
    %v126 = vld [vmem:[#allocation2 + $0x290] sm:$0xff]
    %v127 = vld [vmem:[#allocation2 + $0x298] sm:$0xff]
    %v128 = vld [vmem:[#allocation2 + $0x2a0] sm:$0xff]
    %v129 = vld [vmem:[#allocation2 + $0x2a8] sm:$0xff]
    %v130 = vld [vmem:[#allocation2 + $0x2b0] sm:$0xff]
    %v131 = vld [vmem:[#allocation2 + $0x2b8] sm:$0xff]
    %v132 = vld [vmem:[#allocation2 + $0x2c0] sm:$0xff]
    %v133 = vld [vmem:[#allocation2 + $0x2c8] sm:$0xff]
    %v134 = vld [vmem:[#allocation2 + $0x2d0] sm:$0xff]
    %v135 = vld [vmem:[#allocation2 + $0x2d8] sm:$0xff]
    %v136 = vld [vmem:[#allocation2 + $0x2e0] sm:$0xff]
    %v137 = vld [vmem:[#allocation2 + $0x2e8] sm:$0xff]
    %v138 = vld [vmem:[#allocation2 + $0x2f0] sm:$0xff]
    %v139 = vld [vmem:[#allocation2 + $0x2f8] sm:$0xff]
    %v140 = vld [vmem:[#allocation2 + $0x300] sm:$0xff]
    %v141 = vld [vmem:[#allocation2 + $0x308] sm:$0xff]
    %v142 = vld [vmem:[#allocation2 + $0x310] sm:$0xff]
    %v143 = vld [vmem:[#allocation2 + $0x318] sm:$0xff]
    %v144 = vld [vmem:[#allocation2 + $0x320] sm:$0xff]
    %v145 = vld [vmem:[#allocation2 + $0x328] sm:$0xff]
    %v146 = vld [vmem:[#allocation2 + $0x330] sm:$0xff]
    %v147 = vld [vmem:[#allocation2 + $0x338] sm:$0xff]
    %v148 = vld [vmem:[#allocation2 + $0x340] sm:$0xff]
    %v149 = vld [vmem:[#allocation2 + $0x348] sm:$0xff]
    %v150 = vld [vmem:[#allocation2 + $0x350] sm:$0xff]
    %v151 = vld [vmem:[#allocation2 + $0x358] sm:$0xff]
    %v152 = vld [vmem:[#allocation2 + $0x360] sm:$0xff]
    %v153 = vld [vmem:[#allocation2 + $0x368] sm:$0xff]
    %v154 = vld [vmem:[#allocation2 + $0x370] sm:$0xff]
    %v155 = vld [vmem:[#allocation2 + $0x378] sm:$0xff]
    %v156 = vld [vmem:[#allocation2 + $0x380] sm:$0xff]
    %v157 = vld [vmem:[#allocation2 + $0x388] sm:$0xff]
    %v158 = vld [vmem:[#allocation2 + $0x390] sm:$0xff]
    %v159 = vld [vmem:[#allocation2 + $0x398] sm:$0xff]
    %v160 = vld [vmem:[#allocation2 + $0x3a0] sm:$0xff]
    %v161 = vld [vmem:[#allocation2 + $0x3a8] sm:$0xff]
    %v162 = vld [vmem:[#allocation2 + $0x3b0] sm:$0xff]
    %v163 = vld [vmem:[#allocation2 + $0x3b8] sm:$0xff]
    %v164 = vld [vmem:[#allocation2 + $0x3c0] sm:$0xff]
    %v165 = vld [vmem:[#allocation2 + $0x3c8] sm:$0xff]
    %v166 = vld [vmem:[#allocation2 + $0x3d0] sm:$0xff]
    %v167 = vld [vmem:[#allocation2 + $0x3d8] sm:$0xff]
    %v168 = vld [vmem:[#allocation2 + $0x3e0] sm:$0xff]
    %v169 = vld [vmem:[#allocation2 + $0x3e8] sm:$0xff]
    %v170 = vld [vmem:[#allocation2 + $0x3f0] sm:$0xff]
    %v171 = vld [vmem:[#allocation2 + $0x3f8] sm:$0xff]
    %v172 = vld [vmem:[#allocation2 + $0x400] sm:$0xff]
    %v173 = vld [vmem:[#allocation2 + $0x408] sm:$0xff]
    %v174 = vld [vmem:[#allocation2 + $0x410] sm:$0xff]
    %v175 = vld [vmem:[#allocation2 + $0x418] sm:$0xff]
    %v176 = vld [vmem:[#allocation2 + $0x420] sm:$0xff]
    %v177 = vld [vmem:[#allocation2 + $0x428] sm:$0xff]
    %v178 = vld [vmem:[#allocation2 + $0x430] sm:$0xff]
    %v179 = vld [vmem:[#allocation2 + $0x438] sm:$0xff]
    %v180 = vld [vmem:[#allocation2 + $0x440] sm:$0xff]
    %v181 = vld [vmem:[#allocation2 + $0x448] sm:$0xff]
    %v182 = vld [vmem:[#allocation2 + $0x450] sm:$0xff]
    %v183 = vld [vmem:[#allocation2 + $0x458] sm:$0xff]
    %v184 = vld [vmem:[#allocation2 + $0x460] sm:$0xff]
    %v185 = vld [vmem:[#allocation2 + $0x468] sm:$0xff]
    %v186 = vld [vmem:[#allocation2 + $0x470] sm:$0xff]
    %v187 = vld [vmem:[#allocation2 + $0x478] sm:$0xff]
    %v188 = vld [vmem:[#allocation2 + $0x480] sm:$0xff]
    %v189 = vld [vmem:[#allocation2 + $0x488] sm:$0xff]
    %v190 = vld [vmem:[#allocation2 + $0x490] sm:$0xff]
    %v191 = vld [vmem:[#allocation2 + $0x498] sm:$0xff]
    %v192 = vld [vmem:[#allocation2 + $0x4a0] sm:$0xff]
    %v193 = vld [vmem:[#allocation2 + $0x4a8] sm:$0xff]
    %v194 = vld [vmem:[#allocation2 + $0x4b0] sm:$0xff]
    %v195 = vld [vmem:[#allocation2 + $0x4b8] sm:$0xff]
    %v196 = vld [vmem:[#allocation5] sm:$0xff]
    %v197 = vld [vmem:[#allocation5 + $0x8] sm:$0xff]
    %v198 = vld [vmem:[#allocation5 + $0x10] sm:$0xff]
    %v199 = vld [vmem:[#allocation5 + $0x18] sm:$0xff]
    %v200 = vld [vmem:[#allocation5 + $0x20] sm:$0xff]
    %v201 = vld [vmem:[#allocation5 + $0x28] sm:$0xff]
    %v202 = vld [vmem:[#allocation5 + $0x30] sm:$0xff]
    %v203 = vld [vmem:[#allocation5 + $0x38] sm:$0xff]
    %vm204 = vcmp.ne.s32.totalorder %v196, 255
    %vm205 = vcmp.ne.s32.totalorder %v197, 255
    %vm206 = vcmp.ne.s32.totalorder %v198, 255
    %vm207 = vcmp.ne.s32.totalorder %v199, 255
    %vm208 = vcmp.ne.s32.totalorder %v200, 255
    %vm209 = vcmp.ne.s32.totalorder %v201, 255
    %vm210 = vcmp.ne.s32.totalorder %v202, 255
    %vm211 = vcmp.ne.s32.totalorder %v203, 255
    %v212 = vsel %vm204, %v196, 0
    %v213 = vsel %vm205, %v197, 0
    %v214 = vsel %vm206, %v198, 0
    %v215 = vsel %vm207, %v199, 0
    %v216 = vsel %vm208, %v200, 0
    %v217 = vsel %vm209, %v201, 0
    %v218 = vsel %vm210, %v202, 0
    %v219 = vsel %vm211, %v203, 0
    %vm220 = vcmp.eq.s32.totalorder %v212, 0
    %vm221 = vcmp.eq.s32.totalorder %v213, 0
    %vm222 = vcmp.eq.s32.totalorder %v214, 0
    %vm223 = vcmp.eq.s32.totalorder %v215, 0
    %vm224 = vcmp.eq.s32.totalorder %v216, 0
    %vm225 = vcmp.eq.s32.totalorder %v217, 0
    %vm226 = vcmp.eq.s32.totalorder %v218, 0
    %vm227 = vcmp.eq.s32.totalorder %v219, 0
    %vm228 = vcmp.eq.s32.totalorder %v212, 1
    %vm229 = vcmp.eq.s32.totalorder %v213, 1
    %vm230 = vcmp.eq.s32.totalorder %v214, 1
    %vm231 = vcmp.eq.s32.totalorder %v215, 1
    %vm232 = vcmp.eq.s32.totalorder %v216, 1
    %vm233 = vcmp.eq.s32.totalorder %v217, 1
    %vm234 = vcmp.eq.s32.totalorder %v218, 1
    %vm235 = vcmp.eq.s32.totalorder %v219, 1
    %vm236 = vcmp.eq.s32.totalorder %v212, 2
    %vm237 = vcmp.eq.s32.totalorder %v213, 2
    %vm238 = vcmp.eq.s32.totalorder %v214, 2
    %vm239 = vcmp.eq.s32.totalorder %v215, 2
    %vm240 = vcmp.eq.s32.totalorder %v216, 2
    %vm241 = vcmp.eq.s32.totalorder %v217, 2
    %vm242 = vcmp.eq.s32.totalorder %v218, 2
    %vm243 = vcmp.eq.s32.totalorder %v219, 2
    %vm244 = vcmp.eq.s32.totalorder %v212, 3
    %vm245 = vcmp.eq.s32.totalorder %v213, 3
    %vm246 = vcmp.eq.s32.totalorder %v214, 3
    %vm247 = vcmp.eq.s32.totalorder %v215, 3
    %vm248 = vcmp.eq.s32.totalorder %v216, 3
    %vm249 = vcmp.eq.s32.totalorder %v217, 3
    %vm250 = vcmp.eq.s32.totalorder %v218, 3
    %vm251 = vcmp.eq.s32.totalorder %v219, 3
    %vm252 = vcmp.eq.s32.totalorder %v212, 4
    %vm253 = vcmp.eq.s32.totalorder %v213, 4
    %vm254 = vcmp.eq.s32.totalorder %v214, 4
    %vm255 = vcmp.eq.s32.totalorder %v215, 4
    %vm256 = vcmp.eq.s32.totalorder %v216, 4
    %vm257 = vcmp.eq.s32.totalorder %v217, 4
    %vm258 = vcmp.eq.s32.totalorder %v218, 4
    %vm259 = vcmp.eq.s32.totalorder %v219, 4
    %vm260 = vcmp.eq.s32.totalorder %v212, 5
    %vm261 = vcmp.eq.s32.totalorder %v213, 5
    %vm262 = vcmp.eq.s32.totalorder %v214, 5
    %vm263 = vcmp.eq.s32.totalorder %v215, 5
    %vm264 = vcmp.eq.s32.totalorder %v216, 5
    %vm265 = vcmp.eq.s32.totalorder %v217, 5
    %vm266 = vcmp.eq.s32.totalorder %v218, 5
    %vm267 = vcmp.eq.s32.totalorder %v219, 5
    %vm268 = vcmp.eq.s32.totalorder %v212, 6
    %vm269 = vcmp.eq.s32.totalorder %v213, 6
    %vm270 = vcmp.eq.s32.totalorder %v214, 6
    %vm271 = vcmp.eq.s32.totalorder %v215, 6
    %vm272 = vcmp.eq.s32.totalorder %v216, 6
    %vm273 = vcmp.eq.s32.totalorder %v217, 6
    %vm274 = vcmp.eq.s32.totalorder %v218, 6
    %vm275 = vcmp.eq.s32.totalorder %v219, 6
    %vm276 = vcmp.eq.s32.totalorder %v212, 7
    %vm277 = vcmp.eq.s32.totalorder %v213, 7
    %vm278 = vcmp.eq.s32.totalorder %v214, 7
    %vm279 = vcmp.eq.s32.totalorder %v215, 7
    %vm280 = vcmp.eq.s32.totalorder %v216, 7
    %vm281 = vcmp.eq.s32.totalorder %v217, 7
    %vm282 = vcmp.eq.s32.totalorder %v218, 7
    %vm283 = vcmp.eq.s32.totalorder %v219, 7
    %vm284 = vcmp.eq.s32.totalorder %v212, 8
    %vm285 = vcmp.eq.s32.totalorder %v213, 8
    %vm286 = vcmp.eq.s32.totalorder %v214, 8
    %vm287 = vcmp.eq.s32.totalorder %v215, 8
    %vm288 = vcmp.eq.s32.totalorder %v216, 8
    %vm289 = vcmp.eq.s32.totalorder %v217, 8
    %vm290 = vcmp.eq.s32.totalorder %v218, 8
    %vm291 = vcmp.eq.s32.totalorder %v219, 8
    %vm292 = vcmp.eq.s32.totalorder %v212, 9
    %vm293 = vcmp.eq.s32.totalorder %v213, 9
    %vm294 = vcmp.eq.s32.totalorder %v214, 9
    %vm295 = vcmp.eq.s32.totalorder %v215, 9
    %vm296 = vcmp.eq.s32.totalorder %v216, 9
    %vm297 = vcmp.eq.s32.totalorder %v217, 9
    %vm298 = vcmp.eq.s32.totalorder %v218, 9
    %vm299 = vcmp.eq.s32.totalorder %v219, 9
    %vm300 = vcmp.eq.s32.totalorder %v212, 10
    %vm301 = vcmp.eq.s32.totalorder %v213, 10
    %vm302 = vcmp.eq.s32.totalorder %v214, 10
    %vm303 = vcmp.eq.s32.totalorder %v215, 10
    %vm304 = vcmp.eq.s32.totalorder %v216, 10
    %vm305 = vcmp.eq.s32.totalorder %v217, 10
    %vm306 = vcmp.eq.s32.totalorder %v218, 10
    %vm307 = vcmp.eq.s32.totalorder %v219, 10
    %vm308 = vcmp.eq.s32.totalorder %v212, 11
    %vm309 = vcmp.eq.s32.totalorder %v213, 11
    %vm310 = vcmp.eq.s32.totalorder %v214, 11
    %vm311 = vcmp.eq.s32.totalorder %v215, 11
    %vm312 = vcmp.eq.s32.totalorder %v216, 11
    %vm313 = vcmp.eq.s32.totalorder %v217, 11
    %vm314 = vcmp.eq.s32.totalorder %v218, 11
    %vm315 = vcmp.eq.s32.totalorder %v219, 11
    %vm316 = vcmp.eq.s32.totalorder %v212, 12
    %vm317 = vcmp.eq.s32.totalorder %v213, 12
    %vm318 = vcmp.eq.s32.totalorder %v214, 12
    %vm319 = vcmp.eq.s32.totalorder %v215, 12
    %vm320 = vcmp.eq.s32.totalorder %v216, 12
    %vm321 = vcmp.eq.s32.totalorder %v217, 12
    %vm322 = vcmp.eq.s32.totalorder %v218, 12
    %vm323 = vcmp.eq.s32.totalorder %v219, 12
    %vm324 = vcmp.eq.s32.totalorder %v212, 13
    %vm325 = vcmp.eq.s32.totalorder %v213, 13
    %vm326 = vcmp.eq.s32.totalorder %v214, 13
    %vm327 = vcmp.eq.s32.totalorder %v215, 13
    %vm328 = vcmp.eq.s32.totalorder %v216, 13
    %vm329 = vcmp.eq.s32.totalorder %v217, 13
    %vm330 = vcmp.eq.s32.totalorder %v218, 13
    %vm331 = vcmp.eq.s32.totalorder %v219, 13
    %vm332 = vcmp.eq.s32.totalorder %v212, 14
    %vm333 = vcmp.eq.s32.totalorder %v213, 14
    %vm334 = vcmp.eq.s32.totalorder %v214, 14
    %vm335 = vcmp.eq.s32.totalorder %v215, 14
    %vm336 = vcmp.eq.s32.totalorder %v216, 14
    %vm337 = vcmp.eq.s32.totalorder %v217, 14
    %vm338 = vcmp.eq.s32.totalorder %v218, 14
    %vm339 = vcmp.eq.s32.totalorder %v219, 14
    %vm340 = vcmp.eq.s32.totalorder %v212, 15
    %vm341 = vcmp.eq.s32.totalorder %v213, 15
    %vm342 = vcmp.eq.s32.totalorder %v214, 15
    %vm343 = vcmp.eq.s32.totalorder %v215, 15
    %vm344 = vcmp.eq.s32.totalorder %v216, 15
    %vm345 = vcmp.eq.s32.totalorder %v217, 15
    %vm346 = vcmp.eq.s32.totalorder %v218, 15
    %vm347 = vcmp.eq.s32.totalorder %v219, 15
    %vm348 = vcmp.eq.s32.totalorder %v212, 16
    %vm349 = vcmp.eq.s32.totalorder %v213, 16
    %vm350 = vcmp.eq.s32.totalorder %v214, 16
    %vm351 = vcmp.eq.s32.totalorder %v215, 16
    %vm352 = vcmp.eq.s32.totalorder %v216, 16
    %vm353 = vcmp.eq.s32.totalorder %v217, 16
    %vm354 = vcmp.eq.s32.totalorder %v218, 16
    %vm355 = vcmp.eq.s32.totalorder %v219, 16
    %vm356 = vcmp.eq.s32.totalorder %v212, 17
    %vm357 = vcmp.eq.s32.totalorder %v213, 17
    %vm358 = vcmp.eq.s32.totalorder %v214, 17
    %vm359 = vcmp.eq.s32.totalorder %v215, 17
    %vm360 = vcmp.eq.s32.totalorder %v216, 17
    %vm361 = vcmp.eq.s32.totalorder %v217, 17
    %vm362 = vcmp.eq.s32.totalorder %v218, 17
    %vm363 = vcmp.eq.s32.totalorder %v219, 17
    %vm364 = vcmp.eq.s32.totalorder %v212, 18
    %vm365 = vcmp.eq.s32.totalorder %v213, 18
    %vm366 = vcmp.eq.s32.totalorder %v214, 18
    %vm367 = vcmp.eq.s32.totalorder %v215, 18
    %vm368 = vcmp.eq.s32.totalorder %v216, 18
    %vm369 = vcmp.eq.s32.totalorder %v217, 18
    %vm370 = vcmp.eq.s32.totalorder %v218, 18
    %vm371 = vcmp.eq.s32.totalorder %v219, 18
    %v372 = vsel %vm220, 1, 0
    %v373 = vsel %vm221, 1, 0
    %v374 = vsel %vm222, 1, 0
    %v375 = vsel %vm223, 1, 0
    %v376 = vsel %vm224, 1, 0
    %v377 = vsel %vm225, 1, 0
    %v378 = vsel %vm226, 1, 0
    %v379 = vsel %vm227, 1, 0
    %v380 = vsel %vm228, 1, 0
    %v381 = vsel %vm229, 1, 0
    %v382 = vsel %vm230, 1, 0
    %v383 = vsel %vm231, 1, 0
    %v384 = vsel %vm232, 1, 0
    %v385 = vsel %vm233, 1, 0
    %v386 = vsel %vm234, 1, 0
    %v387 = vsel %vm235, 1, 0
    %v388 = vsel %vm236, 1, 0
    %v389 = vsel %vm237, 1, 0
    %v390 = vsel %vm238, 1, 0
    %v391 = vsel %vm239, 1, 0
    %v392 = vsel %vm240, 1, 0
    %v393 = vsel %vm241, 1, 0
    %v394 = vsel %vm242, 1, 0
    %v395 = vsel %vm243, 1, 0
    %v396 = vsel %vm244, 1, 0
    %v397 = vsel %vm245, 1, 0
    %v398 = vsel %vm246, 1, 0
    %v399 = vsel %vm247, 1, 0
    %v400 = vsel %vm248, 1, 0
    %v401 = vsel %vm249, 1, 0
    %v402 = vsel %vm250, 1, 0
    %v403 = vsel %vm251, 1, 0
    %v404 = vsel %vm252, 1, 0
    %v405 = vsel %vm253, 1, 0
    %v406 = vsel %vm254, 1, 0
    %v407 = vsel %vm255, 1, 0
    %v408 = vsel %vm256, 1, 0
    %v409 = vsel %vm257, 1, 0
    %v410 = vsel %vm258, 1, 0
    %v411 = vsel %vm259, 1, 0
    %v412 = vsel %vm260, 1, 0
    %v413 = vsel %vm261, 1, 0
    %v414 = vsel %vm262, 1, 0
    %v415 = vsel %vm263, 1, 0
    %v416 = vsel %vm264, 1, 0
    %v417 = vsel %vm265, 1, 0
    %v418 = vsel %vm266, 1, 0
    %v419 = vsel %vm267, 1, 0
    %v420 = vsel %vm268, 1, 0
    %v421 = vsel %vm269, 1, 0
    %v422 = vsel %vm270, 1, 0
    %v423 = vsel %vm271, 1, 0
    %v424 = vsel %vm272, 1, 0
    %v425 = vsel %vm273, 1, 0
    %v426 = vsel %vm274, 1, 0
    %v427 = vsel %vm275, 1, 0
    %v428 = vsel %vm276, 1, 0
    %v429 = vsel %vm277, 1, 0
    %v430 = vsel %vm278, 1, 0
    %v431 = vsel %vm279, 1, 0
    %v432 = vsel %vm280, 1, 0
    %v433 = vsel %vm281, 1, 0
    %v434 = vsel %vm282, 1, 0
    %v435 = vsel %vm283, 1, 0
    %v436 = vsel %vm284, 1, 0
    %v437 = vsel %vm285, 1, 0
    %v438 = vsel %vm286, 1, 0
    %v439 = vsel %vm287, 1, 0
    %v440 = vsel %vm288, 1, 0
    %v441 = vsel %vm289, 1, 0
    %v442 = vsel %vm290, 1, 0
    %v443 = vsel %vm291, 1, 0
    %v444 = vsel %vm292, 1, 0
    %v445 = vsel %vm293, 1, 0
    %v446 = vsel %vm294, 1, 0
    %v447 = vsel %vm295, 1, 0
    %v448 = vsel %vm296, 1, 0
    %v449 = vsel %vm297, 1, 0
    %v450 = vsel %vm298, 1, 0
    %v451 = vsel %vm299, 1, 0
    %v452 = vsel %vm300, 1, 0
    %v453 = vsel %vm301, 1, 0
    %v454 = vsel %vm302, 1, 0
    %v455 = vsel %vm303, 1, 0
    %v456 = vsel %vm304, 1, 0
    %v457 = vsel %vm305, 1, 0
    %v458 = vsel %vm306, 1, 0
    %v459 = vsel %vm307, 1, 0
    %v460 = vsel %vm308, 1, 0
    %v461 = vsel %vm309, 1, 0
    %v462 = vsel %vm310, 1, 0
    %v463 = vsel %vm311, 1, 0
    %v464 = vsel %vm312, 1, 0
    %v465 = vsel %vm313, 1, 0
    %v466 = vsel %vm314, 1, 0
    %v467 = vsel %vm315, 1, 0
    %v468 = vsel %vm316, 1, 0
    %v469 = vsel %vm317, 1, 0
    %v470 = vsel %vm318, 1, 0
    %v471 = vsel %vm319, 1, 0
    %v472 = vsel %vm320, 1, 0
    %v473 = vsel %vm321, 1, 0
    %v474 = vsel %vm322, 1, 0
    %v475 = vsel %vm323, 1, 0
    %v476 = vsel %vm324, 1, 0
    %v477 = vsel %vm325, 1, 0
    %v478 = vsel %vm326, 1, 0
    %v479 = vsel %vm327, 1, 0
    %v480 = vsel %vm328, 1, 0
    %v481 = vsel %vm329, 1, 0
    %v482 = vsel %vm330, 1, 0
    %v483 = vsel %vm331, 1, 0
    %v484 = vsel %vm332, 1, 0
    %v485 = vsel %vm333, 1, 0
    %v486 = vsel %vm334, 1, 0
    %v487 = vsel %vm335, 1, 0
    %v488 = vsel %vm336, 1, 0
    %v489 = vsel %vm337, 1, 0
    %v490 = vsel %vm338, 1, 0
    %v491 = vsel %vm339, 1, 0
    %v492 = vsel %vm340, 1, 0
    %v493 = vsel %vm341, 1, 0
    %v494 = vsel %vm342, 1, 0
    %v495 = vsel %vm343, 1, 0
    %v496 = vsel %vm344, 1, 0
    %v497 = vsel %vm345, 1, 0
    %v498 = vsel %vm346, 1, 0
    %v499 = vsel %vm347, 1, 0
    %v500 = vsel %vm348, 1, 0
    %v501 = vsel %vm349, 1, 0
    %v502 = vsel %vm350, 1, 0
    %v503 = vsel %vm351, 1, 0
    %v504 = vsel %vm352, 1, 0
    %v505 = vsel %vm353, 1, 0
    %v506 = vsel %vm354, 1, 0
    %v507 = vsel %vm355, 1, 0
    %v508 = vsel %vm356, 1, 0
    %v509 = vsel %vm357, 1, 0
    %v510 = vsel %vm358, 1, 0
    %v511 = vsel %vm359, 1, 0
    %v512 = vsel %vm360, 1, 0
    %v513 = vsel %vm361, 1, 0
    %v514 = vsel %vm362, 1, 0
    %v515 = vsel %vm363, 1, 0
    %v516 = vsel %vm364, 1, 0
    %v517 = vsel %vm365, 1, 0
    %v518 = vsel %vm366, 1, 0
    %v519 = vsel %vm367, 1, 0
    %v520 = vsel %vm368, 1, 0
    %v521 = vsel %vm369, 1, 0
    %v522 = vsel %vm370, 1, 0
    %v523 = vsel %vm371, 1, 0
    %v524 = vcvt.s32.f32 %v372
    %v525 = vcvt.s32.f32 %v373
    %v526 = vcvt.s32.f32 %v374
    %v527 = vcvt.s32.f32 %v375
    %v528 = vcvt.s32.f32 %v376
    %v529 = vcvt.s32.f32 %v377
    %v530 = vcvt.s32.f32 %v378
    %v531 = vcvt.s32.f32 %v379
    %v532 = vcvt.s32.f32 %v380
    %v533 = vcvt.s32.f32 %v381
    %v534 = vcvt.s32.f32 %v382
    %v535 = vcvt.s32.f32 %v383
    %v536 = vcvt.s32.f32 %v384
    %v537 = vcvt.s32.f32 %v385
    %v538 = vcvt.s32.f32 %v386
    %v539 = vcvt.s32.f32 %v387
    %v540 = vcvt.s32.f32 %v388
    %v541 = vcvt.s32.f32 %v389
    %v542 = vcvt.s32.f32 %v390
    %v543 = vcvt.s32.f32 %v391
    %v544 = vcvt.s32.f32 %v392
    %v545 = vcvt.s32.f32 %v393
    %v546 = vcvt.s32.f32 %v394
    %v547 = vcvt.s32.f32 %v395
    %v548 = vcvt.s32.f32 %v396
    %v549 = vcvt.s32.f32 %v397
    %v550 = vcvt.s32.f32 %v398
    %v551 = vcvt.s32.f32 %v399
    %v552 = vcvt.s32.f32 %v400
    %v553 = vcvt.s32.f32 %v401
    %v554 = vcvt.s32.f32 %v402
    %v555 = vcvt.s32.f32 %v403
    %v556 = vcvt.s32.f32 %v404
    %v557 = vcvt.s32.f32 %v405
    %v558 = vcvt.s32.f32 %v406
    %v559 = vcvt.s32.f32 %v407
    %v560 = vcvt.s32.f32 %v408
    %v561 = vcvt.s32.f32 %v409
    %v562 = vcvt.s32.f32 %v410
    %v563 = vcvt.s32.f32 %v411
    %v564 = vcvt.s32.f32 %v412
    %v565 = vcvt.s32.f32 %v413
    %v566 = vcvt.s32.f32 %v414
    %v567 = vcvt.s32.f32 %v415
    %v568 = vcvt.s32.f32 %v416
    %v569 = vcvt.s32.f32 %v417
    %v570 = vcvt.s32.f32 %v418
    %v571 = vcvt.s32.f32 %v419
    %v572 = vcvt.s32.f32 %v420
    %v573 = vcvt.s32.f32 %v421
    %v574 = vcvt.s32.f32 %v422
    %v575 = vcvt.s32.f32 %v423
    %v576 = vcvt.s32.f32 %v424
    %v577 = vcvt.s32.f32 %v425
    %v578 = vcvt.s32.f32 %v426
    %v579 = vcvt.s32.f32 %v427
    %v580 = vcvt.s32.f32 %v428
    %v581 = vcvt.s32.f32 %v429
    %v582 = vcvt.s32.f32 %v430
    %v583 = vcvt.s32.f32 %v431
    %v584 = vcvt.s32.f32 %v432
    %v585 = vcvt.s32.f32 %v433
    %v586 = vcvt.s32.f32 %v434
    %v587 = vcvt.s32.f32 %v435
    %v588 = vcvt.s32.f32 %v436
    %v589 = vcvt.s32.f32 %v437
    %v590 = vcvt.s32.f32 %v438
    %v591 = vcvt.s32.f32 %v439
    %v592 = vcvt.s32.f32 %v440
    %v593 = vcvt.s32.f32 %v441
    %v594 = vcvt.s32.f32 %v442
    %v595 = vcvt.s32.f32 %v443
    %v596 = vcvt.s32.f32 %v444
    %v597 = vcvt.s32.f32 %v445
    %v598 = vcvt.s32.f32 %v446
    %v599 = vcvt.s32.f32 %v447
    %v600 = vcvt.s32.f32 %v448
    %v601 = vcvt.s32.f32 %v449
    %v602 = vcvt.s32.f32 %v450
    %v603 = vcvt.s32.f32 %v451
    %v604 = vcvt.s32.f32 %v452
    %v605 = vcvt.s32.f32 %v453
    %v606 = vcvt.s32.f32 %v454
    %v607 = vcvt.s32.f32 %v455
    %v608 = vcvt.s32.f32 %v456
    %v609 = vcvt.s32.f32 %v457
    %v610 = vcvt.s32.f32 %v458
    %v611 = vcvt.s32.f32 %v459
    %v612 = vcvt.s32.f32 %v460
    %v613 = vcvt.s32.f32 %v461
    %v614 = vcvt.s32.f32 %v462
    %v615 = vcvt.s32.f32 %v463
    %v616 = vcvt.s32.f32 %v464
    %v617 = vcvt.s32.f32 %v465
    %v618 = vcvt.s32.f32 %v466
    %v619 = vcvt.s32.f32 %v467
    %v620 = vcvt.s32.f32 %v468
    %v621 = vcvt.s32.f32 %v469
    %v622 = vcvt.s32.f32 %v470
    %v623 = vcvt.s32.f32 %v471
    %v624 = vcvt.s32.f32 %v472
    %v625 = vcvt.s32.f32 %v473
    %v626 = vcvt.s32.f32 %v474
    %v627 = vcvt.s32.f32 %v475
    %v628 = vcvt.s32.f32 %v476
    %v629 = vcvt.s32.f32 %v477
    %v630 = vcvt.s32.f32 %v478
    %v631 = vcvt.s32.f32 %v479
    %v632 = vcvt.s32.f32 %v480
    %v633 = vcvt.s32.f32 %v481
    %v634 = vcvt.s32.f32 %v482
    %v635 = vcvt.s32.f32 %v483
    %v636 = vcvt.s32.f32 %v484
    %v637 = vcvt.s32.f32 %v485
    %v638 = vcvt.s32.f32 %v486
    %v639 = vcvt.s32.f32 %v487
    %v640 = vcvt.s32.f32 %v488
    %v641 = vcvt.s32.f32 %v489
    %v642 = vcvt.s32.f32 %v490
    %v643 = vcvt.s32.f32 %v491
    %v644 = vcvt.s32.f32 %v492
    %v645 = vcvt.s32.f32 %v493
    %v646 = vcvt.s32.f32 %v494
    %v647 = vcvt.s32.f32 %v495
    %v648 = vcvt.s32.f32 %v496
    %v649 = vcvt.s32.f32 %v497
    %v650 = vcvt.s32.f32 %v498
    %v651 = vcvt.s32.f32 %v499
    %v652 = vcvt.s32.f32 %v500
    %v653 = vcvt.s32.f32 %v501
    %v654 = vcvt.s32.f32 %v502
    %v655 = vcvt.s32.f32 %v503
    %v656 = vcvt.s32.f32 %v504
    %v657 = vcvt.s32.f32 %v505
    %v658 = vcvt.s32.f32 %v506
    %v659 = vcvt.s32.f32 %v507
    %v660 = vcvt.s32.f32 %v508
    %v661 = vcvt.s32.f32 %v509
    %v662 = vcvt.s32.f32 %v510
    %v663 = vcvt.s32.f32 %v511
    %v664 = vcvt.s32.f32 %v512
    %v665 = vcvt.s32.f32 %v513
    %v666 = vcvt.s32.f32 %v514
    %v667 = vcvt.s32.f32 %v515
    %v668 = vcvt.s32.f32 %v516
    %v669 = vcvt.s32.f32 %v517
    %v670 = vcvt.s32.f32 %v518
    %v671 = vcvt.s32.f32 %v519
    %v672 = vcvt.s32.f32 %v520
    %v673 = vcvt.s32.f32 %v521
    %v674 = vcvt.s32.f32 %v522
    %v675 = vcvt.s32.f32 %v523
    %v676 = vmul.f32 %v44, %v524
    %v677 = vmul.f32 %v45, %v525
    %v678 = vmul.f32 %v46, %v526
    %v679 = vmul.f32 %v47, %v527
    %v680 = vmul.f32 %v48, %v528
    %v681 = vmul.f32 %v49, %v529
    %v682 = vmul.f32 %v50, %v530
    %v683 = vmul.f32 %v51, %v531
    %v684 = vmul.f32 %v52, %v532
    %v685 = vmul.f32 %v53, %v533
    %v686 = vmul.f32 %v54, %v534
    %v687 = vmul.f32 %v55, %v535
    %v688 = vmul.f32 %v56, %v536
    %v689 = vmul.f32 %v57, %v537
    %v690 = vmul.f32 %v58, %v538
    %v691 = vmul.f32 %v59, %v539
    %v692 = vmul.f32 %v60, %v540
    %v693 = vmul.f32 %v61, %v541
    %v694 = vmul.f32 %v62, %v542
    %v695 = vmul.f32 %v63, %v543
    %v696 = vmul.f32 %v64, %v544
    %v697 = vmul.f32 %v65, %v545
    %v698 = vmul.f32 %v66, %v546
    %v699 = vmul.f32 %v67, %v547
    %v700 = vmul.f32 %v68, %v548
    %v701 = vmul.f32 %v69, %v549
    %v702 = vmul.f32 %v70, %v550
    %v703 = vmul.f32 %v71, %v551
    %v704 = vmul.f32 %v72, %v552
    %v705 = vmul.f32 %v73, %v553
    %v706 = vmul.f32 %v74, %v554
    %v707 = vmul.f32 %v75, %v555
    %v708 = vmul.f32 %v76, %v556
    %v709 = vmul.f32 %v77, %v557
    %v710 = vmul.f32 %v78, %v558
    %v711 = vmul.f32 %v79, %v559
    %v712 = vmul.f32 %v80, %v560
    %v713 = vmul.f32 %v81, %v561
    %v714 = vmul.f32 %v82, %v562
    %v715 = vmul.f32 %v83, %v563
    %v716 = vmul.f32 %v84, %v564
    %v717 = vmul.f32 %v85, %v565
    %v718 = vmul.f32 %v86, %v566
    %v719 = vmul.f32 %v87, %v567
    %v720 = vmul.f32 %v88, %v568
    %v721 = vmul.f32 %v89, %v569
    %v722 = vmul.f32 %v90, %v570
    %v723 = vmul.f32 %v91, %v571
    %v724 = vmul.f32 %v92, %v572
    %v725 = vmul.f32 %v93, %v573
    %v726 = vmul.f32 %v94, %v574
    %v727 = vmul.f32 %v95, %v575
    %v728 = vmul.f32 %v96, %v576
    %v729 = vmul.f32 %v97, %v577
    %v730 = vmul.f32 %v98, %v578
    %v731 = vmul.f32 %v99, %v579
    %v732 = vmul.f32 %v100, %v580
    %v733 = vmul.f32 %v101, %v581
    %v734 = vmul.f32 %v102, %v582
    %v735 = vmul.f32 %v103, %v583
    %v736 = vmul.f32 %v104, %v584
    %v737 = vmul.f32 %v105, %v585
    %v738 = vmul.f32 %v106, %v586
    %v739 = vmul.f32 %v107, %v587
    %v740 = vmul.f32 %v108, %v588
    %v741 = vmul.f32 %v109, %v589
    %v742 = vmul.f32 %v110, %v590
    %v743 = vmul.f32 %v111, %v591
    %v744 = vmul.f32 %v112, %v592
    %v745 = vmul.f32 %v113, %v593
    %v746 = vmul.f32 %v114, %v594
    %v747 = vmul.f32 %v115, %v595
    %v748 = vmul.f32 %v116, %v596
    %v749 = vmul.f32 %v117, %v597
    %v750 = vmul.f32 %v118, %v598
    %v751 = vmul.f32 %v119, %v599
    %v752 = vmul.f32 %v120, %v600
    %v753 = vmul.f32 %v121, %v601
    %v754 = vmul.f32 %v122, %v602
    %v755 = vmul.f32 %v123, %v603
    %v756 = vmul.f32 %v124, %v604
    %v757 = vmul.f32 %v125, %v605
    %v758 = vmul.f32 %v126, %v606
    %v759 = vmul.f32 %v127, %v607
    %v760 = vmul.f32 %v128, %v608
    %v761 = vmul.f32 %v129, %v609
    %v762 = vmul.f32 %v130, %v610
    %v763 = vmul.f32 %v131, %v611
    %v764 = vmul.f32 %v132, %v612
    %v765 = vmul.f32 %v133, %v613
    %v766 = vmul.f32 %v134, %v614
    %v767 = vmul.f32 %v135, %v615
    %v768 = vmul.f32 %v136, %v616
    %v769 = vmul.f32 %v137, %v617
    %v770 = vmul.f32 %v138, %v618
    %v771 = vmul.f32 %v139, %v619
    %v772 = vmul.f32 %v140, %v620
    %v773 = vmul.f32 %v141, %v621
    %v774 = vmul.f32 %v142, %v622
    %v775 = vmul.f32 %v143, %v623
    %v776 = vmul.f32 %v144, %v624
    %v777 = vmul.f32 %v145, %v625
    %v778 = vmul.f32 %v146, %v626
    %v779 = vmul.f32 %v147, %v627
    %v780 = vmul.f32 %v148, %v628
    %v781 = vmul.f32 %v149, %v629
    %v782 = vmul.f32 %v150, %v630
    %v783 = vmul.f32 %v151, %v631
    %v784 = vmul.f32 %v152, %v632
    %v785 = vmul.f32 %v153, %v633
    %v786 = vmul.f32 %v154, %v634
    %v787 = vmul.f32 %v155, %v635
    %v788 = vmul.f32 %v156, %v636
    %v789 = vmul.f32 %v157, %v637
    %v790 = vmul.f32 %v158, %v638
    %v791 = vmul.f32 %v159, %v639
    %v792 = vmul.f32 %v160, %v640
    %v793 = vmul.f32 %v161, %v641
    %v794 = vmul.f32 %v162, %v642
    %v795 = vmul.f32 %v163, %v643
    %v796 = vmul.f32 %v164, %v644
    %v797 = vmul.f32 %v165, %v645
    %v798 = vmul.f32 %v166, %v646
    %v799 = vmul.f32 %v167, %v647
    %v800 = vmul.f32 %v168, %v648
    %v801 = vmul.f32 %v169, %v649
    %v802 = vmul.f32 %v170, %v650
    %v803 = vmul.f32 %v171, %v651
    %v804 = vmul.f32 %v172, %v652
    %v805 = vmul.f32 %v173, %v653
    %v806 = vmul.f32 %v174, %v654
    %v807 = vmul.f32 %v175, %v655
    %v808 = vmul.f32 %v176, %v656
    %v809 = vmul.f32 %v177, %v657
    %v810 = vmul.f32 %v178, %v658
    %v811 = vmul.f32 %v179, %v659
    %v812 = vmul.f32 %v180, %v660
    %v813 = vmul.f32 %v181, %v661
    %v814 = vmul.f32 %v182, %v662
    %v815 = vmul.f32 %v183, %v663
    %v816 = vmul.f32 %v184, %v664
    %v817 = vmul.f32 %v185, %v665
    %v818 = vmul.f32 %v186, %v666
    %v819 = vmul.f32 %v187, %v667
    %v820 = vmul.f32 %v188, %v668
    %v821 = vmul.f32 %v189, %v669
    %v822 = vmul.f32 %v190, %v670
    %v823 = vmul.f32 %v191, %v671
    %v824 = vmul.f32 %v192, %v672
    %v825 = vmul.f32 %v193, %v673
    %v826 = vmul.f32 %v194, %v674
    %v827 = vmul.f32 %v195, %v675
    %v828 = vadd.f32 %v676, %v684
    %v829 = vadd.f32 %v828, %v692
    %v830 = vadd.f32 %v829, %v700
    %v831 = vadd.f32 %v830, %v708
    %v832 = vadd.f32 %v831, %v716
    %v833 = vadd.f32 %v832, %v724
    %v834 = vadd.f32 %v833, %v732
    %v835 = vadd.f32 %v834, %v740
    %v836 = vadd.f32 %v835, %v748
    %v837 = vadd.f32 %v836, %v756
    %v838 = vadd.f32 %v837, %v764
    %v839 = vadd.f32 %v838, %v772
    %v840 = vadd.f32 %v839, %v780
    %v841 = vadd.f32 %v840, %v788
    %v842 = vadd.f32 %v841, %v796
    %v843 = vadd.f32 %v842, %v804
    %v844 = vadd.f32 %v843, %v812
    %v845 = vadd.f32 %v844, %v820
    %v846 = vadd.f32 %v677, %v685
    %v847 = vadd.f32 %v846, %v693
    %v848 = vadd.f32 %v847, %v701
    %v849 = vadd.f32 %v848, %v709
    %v850 = vadd.f32 %v849, %v717
    %v851 = vadd.f32 %v850, %v725
    %v852 = vadd.f32 %v851, %v733
    %v853 = vadd.f32 %v852, %v741
    %v854 = vadd.f32 %v853, %v749
    %v855 = vadd.f32 %v854, %v757
    %v856 = vadd.f32 %v855, %v765
    %v857 = vadd.f32 %v856, %v773
    %v858 = vadd.f32 %v857, %v781
    %v859 = vadd.f32 %v858, %v789
    %v860 = vadd.f32 %v859, %v797
    %v861 = vadd.f32 %v860, %v805
    %v862 = vadd.f32 %v861, %v813
    %v863 = vadd.f32 %v862, %v821
    %v864 = vadd.f32 %v678, %v686
    %v865 = vadd.f32 %v864, %v694
    %v866 = vadd.f32 %v865, %v702
    %v867 = vadd.f32 %v866, %v710
    %v868 = vadd.f32 %v867, %v718
    %v869 = vadd.f32 %v868, %v726
    %v870 = vadd.f32 %v869, %v734
    %v871 = vadd.f32 %v870, %v742
    %v872 = vadd.f32 %v871, %v750
    %v873 = vadd.f32 %v872, %v758
    %v874 = vadd.f32 %v873, %v766
    %v875 = vadd.f32 %v874, %v774
    %v876 = vadd.f32 %v875, %v782
    %v877 = vadd.f32 %v876, %v790
    %v878 = vadd.f32 %v877, %v798
    %v879 = vadd.f32 %v878, %v806
    %v880 = vadd.f32 %v879, %v814
    %v881 = vadd.f32 %v880, %v822
    %v882 = vadd.f32 %v679, %v687
    %v883 = vadd.f32 %v882, %v695
    %v884 = vadd.f32 %v883, %v703
    %v885 = vadd.f32 %v884, %v711
    %v886 = vadd.f32 %v885, %v719
    %v887 = vadd.f32 %v886, %v727
    %v888 = vadd.f32 %v887, %v735
    %v889 = vadd.f32 %v888, %v743
    %v890 = vadd.f32 %v889, %v751
    %v891 = vadd.f32 %v890, %v759
    %v892 = vadd.f32 %v891, %v767
    %v893 = vadd.f32 %v892, %v775
    %v894 = vadd.f32 %v893, %v783
    %v895 = vadd.f32 %v894, %v791
    %v896 = vadd.f32 %v895, %v799
    %v897 = vadd.f32 %v896, %v807
    %v898 = vadd.f32 %v897, %v815
    %v899 = vadd.f32 %v898, %v823
    %v900 = vadd.f32 %v680, %v688
    %v901 = vadd.f32 %v900, %v696
    %v902 = vadd.f32 %v901, %v704
    %v903 = vadd.f32 %v902, %v712
    %v904 = vadd.f32 %v903, %v720
    %v905 = vadd.f32 %v904, %v728
    %v906 = vadd.f32 %v905, %v736
    %v907 = vadd.f32 %v906, %v744
    %v908 = vadd.f32 %v907, %v752
    %v909 = vadd.f32 %v908, %v760
    %v910 = vadd.f32 %v909, %v768
    %v911 = vadd.f32 %v910, %v776
    %v912 = vadd.f32 %v911, %v784
    %v913 = vadd.f32 %v912, %v792
    %v914 = vadd.f32 %v913, %v800
    %v915 = vadd.f32 %v914, %v808
    %v916 = vadd.f32 %v915, %v816
    %v917 = vadd.f32 %v916, %v824
    %v918 = vadd.f32 %v681, %v689
    %v919 = vadd.f32 %v918, %v697
    %v920 = vadd.f32 %v919, %v705
    %v921 = vadd.f32 %v920, %v713
    %v922 = vadd.f32 %v921, %v721
    %v923 = vadd.f32 %v922, %v729
    %v924 = vadd.f32 %v923, %v737
    %v925 = vadd.f32 %v924, %v745
    %v926 = vadd.f32 %v925, %v753
    %v927 = vadd.f32 %v926, %v761
    %v928 = vadd.f32 %v927, %v769
    %v929 = vadd.f32 %v928, %v777
    %v930 = vadd.f32 %v929, %v785
    %v931 = vadd.f32 %v930, %v793
    %v932 = vadd.f32 %v931, %v801
    %v933 = vadd.f32 %v932, %v809
    %v934 = vadd.f32 %v933, %v817
    %v935 = vadd.f32 %v934, %v825
    %v936 = vadd.f32 %v682, %v690
    %v937 = vadd.f32 %v936, %v698
    %v938 = vadd.f32 %v937, %v706
    %v939 = vadd.f32 %v938, %v714
    %v940 = vadd.f32 %v939, %v722
    %v941 = vadd.f32 %v940, %v730
    %v942 = vadd.f32 %v941, %v738
    %v943 = vadd.f32 %v942, %v746
    %v944 = vadd.f32 %v943, %v754
    %v945 = vadd.f32 %v944, %v762
    %v946 = vadd.f32 %v945, %v770
    %v947 = vadd.f32 %v946, %v778
    %v948 = vadd.f32 %v947, %v786
    %v949 = vadd.f32 %v948, %v794
    %v950 = vadd.f32 %v949, %v802
    %v951 = vadd.f32 %v950, %v810
    %v952 = vadd.f32 %v951, %v818
    %v953 = vadd.f32 %v952, %v826
    %v954 = vadd.f32 %v683, %v691
    %v955 = vadd.f32 %v954, %v699
    %v956 = vadd.f32 %v955, %v707
    %v957 = vadd.f32 %v956, %v715
    %v958 = vadd.f32 %v957, %v723
    %v959 = vadd.f32 %v958, %v731
    %v960 = vadd.f32 %v959, %v739
    %v961 = vadd.f32 %v960, %v747
    %v962 = vadd.f32 %v961, %v755
    %v963 = vadd.f32 %v962, %v763
    %v964 = vadd.f32 %v963, %v771
    %v965 = vadd.f32 %v964, %v779
    %v966 = vadd.f32 %v965, %v787
    %v967 = vadd.f32 %v966, %v795
    %v968 = vadd.f32 %v967, %v803
    %v969 = vadd.f32 %v968, %v811
    %v970 = vadd.f32 %v969, %v819
    %v971 = vadd.f32 %v970, %v827
    %v972 = vmax.f32 %v44, %v52
    %v973 = vmax.f32 %v972, %v60
    %v974 = vmax.f32 %v973, %v68
    %v975 = vmax.f32 %v974, %v76
    %v976 = vmax.f32 %v975, %v84
    %v977 = vmax.f32 %v976, %v92
    %v978 = vmax.f32 %v977, %v100
    %v979 = vmax.f32 %v978, %v108
    %v980 = vmax.f32 %v979, %v116
    %v981 = vmax.f32 %v980, %v124
    %v982 = vmax.f32 %v981, %v132
    %v983 = vmax.f32 %v982, %v140
    %v984 = vmax.f32 %v983, %v148
    %v985 = vmax.f32 %v984, %v156
    %v986 = vmax.f32 %v985, %v164
    %v987 = vmax.f32 %v986, %v172
    %v988 = vmax.f32 %v987, %v180
    %v989 = vmax.f32 %v988, %v188
    %v990 = vmax.f32 %v45, %v53
    %v991 = vmax.f32 %v990, %v61
    %v992 = vmax.f32 %v991, %v69
    %v993 = vmax.f32 %v992, %v77
    %v994 = vmax.f32 %v993, %v85
    %v995 = vmax.f32 %v994, %v93
    %v996 = vmax.f32 %v995, %v101
    %v997 = vmax.f32 %v996, %v109
    %v998 = vmax.f32 %v997, %v117
    %v999 = vmax.f32 %v998, %v125
    %v1000 = vmax.f32 %v999, %v133
    %v1001 = vmax.f32 %v1000, %v141
    %v1002 = vmax.f32 %v1001, %v149
    %v1003 = vmax.f32 %v1002, %v157
    %v1004 = vmax.f32 %v1003, %v165
    %v1005 = vmax.f32 %v1004, %v173
    %v1006 = vmax.f32 %v1005, %v181
    %v1007 = vmax.f32 %v1006, %v189
    %v1008 = vmax.f32 %v46, %v54
    %v1009 = vmax.f32 %v1008, %v62
    %v1010 = vmax.f32 %v1009, %v70
    %v1011 = vmax.f32 %v1010, %v78
    %v1012 = vmax.f32 %v1011, %v86
    %v1013 = vmax.f32 %v1012, %v94
    %v1014 = vmax.f32 %v1013, %v102
    %v1015 = vmax.f32 %v1014, %v110
    %v1016 = vmax.f32 %v1015, %v118
    %v1017 = vmax.f32 %v1016, %v126
    %v1018 = vmax.f32 %v1017, %v134
    %v1019 = vmax.f32 %v1018, %v142
    %v1020 = vmax.f32 %v1019, %v150
    %v1021 = vmax.f32 %v1020, %v158
    %v1022 = vmax.f32 %v1021, %v166
    %v1023 = vmax.f32 %v1022, %v174
    %v1024 = vmax.f32 %v1023, %v182
    %v1025 = vmax.f32 %v1024, %v190
    %v1026 = vmax.f32 %v47, %v55
    %v1027 = vmax.f32 %v1026, %v63
    %v1028 = vmax.f32 %v1027, %v71
    %v1029 = vmax.f32 %v1028, %v79
    %v1030 = vmax.f32 %v1029, %v87
    %v1031 = vmax.f32 %v1030, %v95
    %v1032 = vmax.f32 %v1031, %v103
    %v1033 = vmax.f32 %v1032, %v111
    %v1034 = vmax.f32 %v1033, %v119
    %v1035 = vmax.f32 %v1034, %v127
    %v1036 = vmax.f32 %v1035, %v135
    %v1037 = vmax.f32 %v1036, %v143
    %v1038 = vmax.f32 %v1037, %v151
    %v1039 = vmax.f32 %v1038, %v159
    %v1040 = vmax.f32 %v1039, %v167
    %v1041 = vmax.f32 %v1040, %v175
    %v1042 = vmax.f32 %v1041, %v183
    %v1043 = vmax.f32 %v1042, %v191
    %v1044 = vmax.f32 %v48, %v56
    %v1045 = vmax.f32 %v1044, %v64
    %v1046 = vmax.f32 %v1045, %v72
    %v1047 = vmax.f32 %v1046, %v80
    %v1048 = vmax.f32 %v1047, %v88
    %v1049 = vmax.f32 %v1048, %v96
    %v1050 = vmax.f32 %v1049, %v104
    %v1051 = vmax.f32 %v1050, %v112
    %v1052 = vmax.f32 %v1051, %v120
    %v1053 = vmax.f32 %v1052, %v128
    %v1054 = vmax.f32 %v1053, %v136
    %v1055 = vmax.f32 %v1054, %v144
    %v1056 = vmax.f32 %v1055, %v152
    %v1057 = vmax.f32 %v1056, %v160
    %v1058 = vmax.f32 %v1057, %v168
    %v1059 = vmax.f32 %v1058, %v176
    %v1060 = vmax.f32 %v1059, %v184
    %v1061 = vmax.f32 %v1060, %v192
    %v1062 = vmax.f32 %v49, %v57
    %v1063 = vmax.f32 %v1062, %v65
    %v1064 = vmax.f32 %v1063, %v73
    %v1065 = vmax.f32 %v1064, %v81
    %v1066 = vmax.f32 %v1065, %v89
    %v1067 = vmax.f32 %v1066, %v97
    %v1068 = vmax.f32 %v1067, %v105
    %v1069 = vmax.f32 %v1068, %v113
    %v1070 = vmax.f32 %v1069, %v121
    %v1071 = vmax.f32 %v1070, %v129
    %v1072 = vmax.f32 %v1071, %v137
    %v1073 = vmax.f32 %v1072, %v145
    %v1074 = vmax.f32 %v1073, %v153
    %v1075 = vmax.f32 %v1074, %v161
    %v1076 = vmax.f32 %v1075, %v169
    %v1077 = vmax.f32 %v1076, %v177
    %v1078 = vmax.f32 %v1077, %v185
    %v1079 = vmax.f32 %v1078, %v193
    %v1080 = vmax.f32 %v50, %v58
    %v1081 = vmax.f32 %v1080, %v66
    %v1082 = vmax.f32 %v1081, %v74
    %v1083 = vmax.f32 %v1082, %v82
    %v1084 = vmax.f32 %v1083, %v90
    %v1085 = vmax.f32 %v1084, %v98
    %v1086 = vmax.f32 %v1085, %v106
    %v1087 = vmax.f32 %v1086, %v114
    %v1088 = vmax.f32 %v1087, %v122
    %v1089 = vmax.f32 %v1088, %v130
    %v1090 = vmax.f32 %v1089, %v138
    %v1091 = vmax.f32 %v1090, %v146
    %v1092 = vmax.f32 %v1091, %v154
    %v1093 = vmax.f32 %v1092, %v162
    %v1094 = vmax.f32 %v1093, %v170
    %v1095 = vmax.f32 %v1094, %v178
    %v1096 = vmax.f32 %v1095, %v186
    %v1097 = vmax.f32 %v1096, %v194
    %v1098 = vmax.f32 %v51, %v59
    %v1099 = vmax.f32 %v1098, %v67
    %v1100 = vmax.f32 %v1099, %v75
    %v1101 = vmax.f32 %v1100, %v83
    %v1102 = vmax.f32 %v1101, %v91
    %v1103 = vmax.f32 %v1102, %v99
    %v1104 = vmax.f32 %v1103, %v107
    %v1105 = vmax.f32 %v1104, %v115
    %v1106 = vmax.f32 %v1105, %v123
    %v1107 = vmax.f32 %v1106, %v131
    %v1108 = vmax.f32 %v1107, %v139
    %v1109 = vmax.f32 %v1108, %v147
    %v1110 = vmax.f32 %v1109, %v155
    %v1111 = vmax.f32 %v1110, %v163
    %v1112 = vmax.f32 %v1111, %v171
    %v1113 = vmax.f32 %v1112, %v179
    %v1114 = vmax.f32 %v1113, %v187
    %v1115 = vmax.f32 %v1114, %v195
    %v1116 = vsub.f32 %v44, %v989
    %v1117 = vsub.f32 %v45, %v1007
    %v1118 = vsub.f32 %v46, %v1025
    %v1119 = vsub.f32 %v47, %v1043
    %v1120 = vsub.f32 %v48, %v1061
    %v1121 = vsub.f32 %v49, %v1079
    %v1122 = vsub.f32 %v50, %v1097
    %v1123 = vsub.f32 %v51, %v1115
    %v1124 = vsub.f32 %v52, %v989
    %v1125 = vsub.f32 %v53, %v1007
    %v1126 = vsub.f32 %v54, %v1025
    %v1127 = vsub.f32 %v55, %v1043
    %v1128 = vsub.f32 %v56, %v1061
    %v1129 = vsub.f32 %v57, %v1079
    %v1130 = vsub.f32 %v58, %v1097
    %v1131 = vsub.f32 %v59, %v1115
    %v1132 = vsub.f32 %v60, %v989
    %v1133 = vsub.f32 %v61, %v1007
    %v1134 = vsub.f32 %v62, %v1025
    %v1135 = vsub.f32 %v63, %v1043
    %v1136 = vsub.f32 %v64, %v1061
    %v1137 = vsub.f32 %v65, %v1079
    %v1138 = vsub.f32 %v66, %v1097
    %v1139 = vsub.f32 %v67, %v1115
    %v1140 = vsub.f32 %v68, %v989
    %v1141 = vsub.f32 %v69, %v1007
    %v1142 = vsub.f32 %v70, %v1025
    %v1143 = vsub.f32 %v71, %v1043
    %v1144 = vsub.f32 %v72, %v1061
    %v1145 = vsub.f32 %v73, %v1079
    %v1146 = vsub.f32 %v74, %v1097
    %v1147 = vsub.f32 %v75, %v1115
    %v1148 = vsub.f32 %v76, %v989
    %v1149 = vsub.f32 %v77, %v1007
    %v1150 = vsub.f32 %v78, %v1025
    %v1151 = vsub.f32 %v79, %v1043
    %v1152 = vsub.f32 %v80, %v1061
    %v1153 = vsub.f32 %v81, %v1079
    %v1154 = vsub.f32 %v82, %v1097
    %v1155 = vsub.f32 %v83, %v1115
    %v1156 = vsub.f32 %v84, %v989
    %v1157 = vsub.f32 %v85, %v1007
    %v1158 = vsub.f32 %v86, %v1025
    %v1159 = vsub.f32 %v87, %v1043
    %v1160 = vsub.f32 %v88, %v1061
    %v1161 = vsub.f32 %v89, %v1079
    %v1162 = vsub.f32 %v90, %v1097
    %v1163 = vsub.f32 %v91, %v1115
    %v1164 = vsub.f32 %v92, %v989
    %v1165 = vsub.f32 %v93, %v1007
    %v1166 = vsub.f32 %v94, %v1025
    %v1167 = vsub.f32 %v95, %v1043
    %v1168 = vsub.f32 %v96, %v1061
    %v1169 = vsub.f32 %v97, %v1079
    %v1170 = vsub.f32 %v98, %v1097
    %v1171 = vsub.f32 %v99, %v1115
    %v1172 = vsub.f32 %v100, %v989
    %v1173 = vsub.f32 %v101, %v1007
    %v1174 = vsub.f32 %v102, %v1025
    %v1175 = vsub.f32 %v103, %v1043
    %v1176 = vsub.f32 %v104, %v1061
    %v1177 = vsub.f32 %v105, %v1079
    %v1178 = vsub.f32 %v106, %v1097
    %v1179 = vsub.f32 %v107, %v1115
    %v1180 = vsub.f32 %v108, %v989
    %v1181 = vsub.f32 %v109, %v1007
    %v1182 = vsub.f32 %v110, %v1025
    %v1183 = vsub.f32 %v111, %v1043
    %v1184 = vsub.f32 %v112, %v1061
    %v1185 = vsub.f32 %v113, %v1079
    %v1186 = vsub.f32 %v114, %v1097
    %v1187 = vsub.f32 %v115, %v1115
    %v1188 = vsub.f32 %v116, %v989
    %v1189 = vsub.f32 %v117, %v1007
    %v1190 = vsub.f32 %v118, %v1025
    %v1191 = vsub.f32 %v119, %v1043
    %v1192 = vsub.f32 %v120, %v1061
    %v1193 = vsub.f32 %v121, %v1079
    %v1194 = vsub.f32 %v122, %v1097
    %v1195 = vsub.f32 %v123, %v1115
    %v1196 = vsub.f32 %v124, %v989
    %v1197 = vsub.f32 %v125, %v1007
    %v1198 = vsub.f32 %v126, %v1025
    %v1199 = vsub.f32 %v127, %v1043
    %v1200 = vsub.f32 %v128, %v1061
    %v1201 = vsub.f32 %v129, %v1079
    %v1202 = vsub.f32 %v130, %v1097
    %v1203 = vsub.f32 %v131, %v1115
    %v1204 = vsub.f32 %v132, %v989
    %v1205 = vsub.f32 %v133, %v1007
    %v1206 = vsub.f32 %v134, %v1025
    %v1207 = vsub.f32 %v135, %v1043
    %v1208 = vsub.f32 %v136, %v1061
    %v1209 = vsub.f32 %v137, %v1079
    %v1210 = vsub.f32 %v138, %v1097
    %v1211 = vsub.f32 %v139, %v1115
    %v1212 = vsub.f32 %v140, %v989
    %v1213 = vsub.f32 %v141, %v1007
    %v1214 = vsub.f32 %v142, %v1025
    %v1215 = vsub.f32 %v143, %v1043
    %v1216 = vsub.f32 %v144, %v1061
    %v1217 = vsub.f32 %v145, %v1079
    %v1218 = vsub.f32 %v146, %v1097
    %v1219 = vsub.f32 %v147, %v1115
    %v1220 = vsub.f32 %v148, %v989
    %v1221 = vsub.f32 %v149, %v1007
    %v1222 = vsub.f32 %v150, %v1025
    %v1223 = vsub.f32 %v151, %v1043
    %v1224 = vsub.f32 %v152, %v1061
    %v1225 = vsub.f32 %v153, %v1079
    %v1226 = vsub.f32 %v154, %v1097
    %v1227 = vsub.f32 %v155, %v1115
    %v1228 = vsub.f32 %v156, %v989
    %v1229 = vsub.f32 %v157, %v1007
    %v1230 = vsub.f32 %v158, %v1025
    %v1231 = vsub.f32 %v159, %v1043
    %v1232 = vsub.f32 %v160, %v1061
    %v1233 = vsub.f32 %v161, %v1079
    %v1234 = vsub.f32 %v162, %v1097
    %v1235 = vsub.f32 %v163, %v1115
    %v1236 = vsub.f32 %v164, %v989
    %v1237 = vsub.f32 %v165, %v1007
    %v1238 = vsub.f32 %v166, %v1025
    %v1239 = vsub.f32 %v167, %v1043
    %v1240 = vsub.f32 %v168, %v1061
    %v1241 = vsub.f32 %v169, %v1079
    %v1242 = vsub.f32 %v170, %v1097
    %v1243 = vsub.f32 %v171, %v1115
    %v1244 = vsub.f32 %v172, %v989
    %v1245 = vsub.f32 %v173, %v1007
    %v1246 = vsub.f32 %v174, %v1025
    %v1247 = vsub.f32 %v175, %v1043
    %v1248 = vsub.f32 %v176, %v1061
    %v1249 = vsub.f32 %v177, %v1079
    %v1250 = vsub.f32 %v178, %v1097
    %v1251 = vsub.f32 %v179, %v1115
    %v1252 = vsub.f32 %v180, %v989
    %v1253 = vsub.f32 %v181, %v1007
    %v1254 = vsub.f32 %v182, %v1025
    %v1255 = vsub.f32 %v183, %v1043
    %v1256 = vsub.f32 %v184, %v1061
    %v1257 = vsub.f32 %v185, %v1079
    %v1258 = vsub.f32 %v186, %v1097
    %v1259 = vsub.f32 %v187, %v1115
    %v1260 = vsub.f32 %v188, %v989
    %v1261 = vsub.f32 %v189, %v1007
    %v1262 = vsub.f32 %v190, %v1025
    %v1263 = vsub.f32 %v191, %v1043
    %v1264 = vsub.f32 %v192, %v1061
    %v1265 = vsub.f32 %v193, %v1079
    %v1266 = vsub.f32 %v194, %v1097
    %v1267 = vsub.f32 %v195, %v1115
    %v1268 = vmul.f32 %v1116, 1.442695
    %v1269 = vpow.pop %v1268
    %v1270 = vmul.f32 %v1117, 1.442695
    %v1271 = vpow.pop %v1270
    %v1272 = vmul.f32 %v1118, 1.442695
    %v1273 = vpow.pop %v1272
    %v1274 = vmul.f32 %v1119, 1.442695
    %v1275 = vpow.pop %v1274
    %v1276 = vmul.f32 %v1120, 1.442695
    %v1277 = vpow.pop %v1276
    %v1278 = vmul.f32 %v1121, 1.442695
    %v1279 = vpow.pop %v1278
    %v1280 = vmul.f32 %v1122, 1.442695
    %v1281 = vpow.pop %v1280
    %v1282 = vmul.f32 %v1123, 1.442695
    %v1283 = vpow.pop %v1282
    %v1284 = vmul.f32 %v1124, 1.442695
    %v1285 = vpow.pop %v1284
    %v1286 = vmul.f32 %v1125, 1.442695
    %v1287 = vpow.pop %v1286
    %v1288 = vmul.f32 %v1126, 1.442695
    %v1289 = vpow.pop %v1288
    %v1290 = vmul.f32 %v1127, 1.442695
    %v1291 = vpow.pop %v1290
    %v1292 = vmul.f32 %v1128, 1.442695
    %v1293 = vpow.pop %v1292
    %v1294 = vmul.f32 %v1129, 1.442695
    %v1295 = vpow.pop %v1294
    %v1296 = vmul.f32 %v1130, 1.442695
    %v1297 = vpow.pop %v1296
    %v1298 = vmul.f32 %v1131, 1.442695
    %v1299 = vpow.pop %v1298
    %v1300 = vmul.f32 %v1132, 1.442695
    %v1301 = vpow.pop %v1300
    %v1302 = vmul.f32 %v1133, 1.442695
    %v1303 = vpow.pop %v1302
    %v1304 = vmul.f32 %v1134, 1.442695
    %v1305 = vpow.pop %v1304
    %v1306 = vmul.f32 %v1135, 1.442695
    %v1307 = vpow.pop %v1306
    %v1308 = vmul.f32 %v1136, 1.442695
    %v1309 = vpow.pop %v1308
    %v1310 = vmul.f32 %v1137, 1.442695
    %v1311 = vpow.pop %v1310
    %v1312 = vmul.f32 %v1138, 1.442695
    %v1313 = vpow.pop %v1312
    %v1314 = vmul.f32 %v1139, 1.442695
    %v1315 = vpow.pop %v1314
    %v1316 = vmul.f32 %v1140, 1.442695
    %v1317 = vpow.pop %v1316
    %v1318 = vmul.f32 %v1141, 1.442695
    %v1319 = vpow.pop %v1318
    %v1320 = vmul.f32 %v1142, 1.442695
    %v1321 = vpow.pop %v1320
    %v1322 = vmul.f32 %v1143, 1.442695
    %v1323 = vpow.pop %v1322
    %v1324 = vmul.f32 %v1144, 1.442695
    %v1325 = vpow.pop %v1324
    %v1326 = vmul.f32 %v1145, 1.442695
    %v1327 = vpow.pop %v1326
    %v1328 = vmul.f32 %v1146, 1.442695
    %v1329 = vpow.pop %v1328
    %v1330 = vmul.f32 %v1147, 1.442695
    %v1331 = vpow.pop %v1330
    %v1332 = vmul.f32 %v1148, 1.442695
    %v1333 = vpow.pop %v1332
    %v1334 = vmul.f32 %v1149, 1.442695
    %v1335 = vpow.pop %v1334
    %v1336 = vmul.f32 %v1150, 1.442695
    %v1337 = vpow.pop %v1336
    %v1338 = vmul.f32 %v1151, 1.442695
    %v1339 = vpow.pop %v1338
    %v1340 = vmul.f32 %v1152, 1.442695
    %v1341 = vpow.pop %v1340
    %v1342 = vmul.f32 %v1153, 1.442695
    %v1343 = vpow.pop %v1342
    %v1344 = vmul.f32 %v1154, 1.442695
    %v1345 = vpow.pop %v1344
    %v1346 = vmul.f32 %v1155, 1.442695
    %v1347 = vpow.pop %v1346
    %v1348 = vmul.f32 %v1156, 1.442695
    %v1349 = vpow.pop %v1348
    %v1350 = vmul.f32 %v1157, 1.442695
    %v1351 = vpow.pop %v1350
    %v1352 = vmul.f32 %v1158, 1.442695
    %v1353 = vpow.pop %v1352
    %v1354 = vmul.f32 %v1159, 1.442695
    %v1355 = vpow.pop %v1354
    %v1356 = vmul.f32 %v1160, 1.442695
    %v1357 = vpow.pop %v1356
    %v1358 = vmul.f32 %v1161, 1.442695
    %v1359 = vpow.pop %v1358
    %v1360 = vmul.f32 %v1162, 1.442695
    %v1361 = vpow.pop %v1360
    %v1362 = vmul.f32 %v1163, 1.442695
    %v1363 = vpow.pop %v1362
    %v1364 = vmul.f32 %v1164, 1.442695
    %v1365 = vpow.pop %v1364
    %v1366 = vmul.f32 %v1165, 1.442695
    %v1367 = vpow.pop %v1366
    %v1368 = vmul.f32 %v1166, 1.442695
    %v1369 = vpow.pop %v1368
    %v1370 = vmul.f32 %v1167, 1.442695
    %v1371 = vpow.pop %v1370
    %v1372 = vmul.f32 %v1168, 1.442695
    %v1373 = vpow.pop %v1372
    %v1374 = vmul.f32 %v1169, 1.442695
    %v1375 = vpow.pop %v1374
    %v1376 = vmul.f32 %v1170, 1.442695
    %v1377 = vpow.pop %v1376
    %v1378 = vmul.f32 %v1171, 1.442695
    %v1379 = vpow.pop %v1378
    %v1380 = vmul.f32 %v1172, 1.442695
    %v1381 = vpow.pop %v1380
    %v1382 = vmul.f32 %v1173, 1.442695
    %v1383 = vpow.pop %v1382
    %v1384 = vmul.f32 %v1174, 1.442695
    %v1385 = vpow.pop %v1384
    %v1386 = vmul.f32 %v1175, 1.442695
    %v1387 = vpow.pop %v1386
    %v1388 = vmul.f32 %v1176, 1.442695
    %v1389 = vpow.pop %v1388
    %v1390 = vmul.f32 %v1177, 1.442695
    %v1391 = vpow.pop %v1390
    %v1392 = vmul.f32 %v1178, 1.442695
    %v1393 = vpow.pop %v1392
    %v1394 = vmul.f32 %v1179, 1.442695
    %v1395 = vpow.pop %v1394
    %v1396 = vmul.f32 %v1180, 1.442695
    %v1397 = vpow.pop %v1396
    %v1398 = vmul.f32 %v1181, 1.442695
    %v1399 = vpow.pop %v1398
    %v1400 = vmul.f32 %v1182, 1.442695
    %v1401 = vpow.pop %v1400
    %v1402 = vmul.f32 %v1183, 1.442695
    %v1403 = vpow.pop %v1402
    %v1404 = vmul.f32 %v1184, 1.442695
    %v1405 = vpow.pop %v1404
    %v1406 = vmul.f32 %v1185, 1.442695
    %v1407 = vpow.pop %v1406
    %v1408 = vmul.f32 %v1186, 1.442695
    %v1409 = vpow.pop %v1408
    %v1410 = vmul.f32 %v1187, 1.442695
    %v1411 = vpow.pop %v1410
    %v1412 = vmul.f32 %v1188, 1.442695
    %v1413 = vpow.pop %v1412
    %v1414 = vmul.f32 %v1189, 1.442695
    %v1415 = vpow.pop %v1414
    %v1416 = vmul.f32 %v1190, 1.442695
    %v1417 = vpow.pop %v1416
    %v1418 = vmul.f32 %v1191, 1.442695
    %v1419 = vpow.pop %v1418
    %v1420 = vmul.f32 %v1192, 1.442695
    %v1421 = vpow.pop %v1420
    %v1422 = vmul.f32 %v1193, 1.442695
    %v1423 = vpow.pop %v1422
    %v1424 = vmul.f32 %v1194, 1.442695
    %v1425 = vpow.pop %v1424
    %v1426 = vmul.f32 %v1195, 1.442695
    %v1427 = vpow.pop %v1426
    %v1428 = vmul.f32 %v1196, 1.442695
    %v1429 = vpow.pop %v1428
    %v1430 = vmul.f32 %v1197, 1.442695
    %v1431 = vpow.pop %v1430
    %v1432 = vmul.f32 %v1198, 1.442695
    %v1433 = vpow.pop %v1432
    %v1434 = vmul.f32 %v1199, 1.442695
    %v1435 = vpow.pop %v1434
    %v1436 = vmul.f32 %v1200, 1.442695
    %v1437 = vpow.pop %v1436
    %v1438 = vmul.f32 %v1201, 1.442695
    %v1439 = vpow.pop %v1438
    %v1440 = vmul.f32 %v1202, 1.442695
    %v1441 = vpow.pop %v1440
    %v1442 = vmul.f32 %v1203, 1.442695
    %v1443 = vpow.pop %v1442
    %v1444 = vmul.f32 %v1204, 1.442695
    %v1445 = vpow.pop %v1444
    %v1446 = vmul.f32 %v1205, 1.442695
    %v1447 = vpow.pop %v1446
    %v1448 = vmul.f32 %v1206, 1.442695
    %v1449 = vpow.pop %v1448
    %v1450 = vmul.f32 %v1207, 1.442695
    %v1451 = vpow.pop %v1450
    %v1452 = vmul.f32 %v1208, 1.442695
    %v1453 = vpow.pop %v1452
    %v1454 = vmul.f32 %v1209, 1.442695
    %v1455 = vpow.pop %v1454
    %v1456 = vmul.f32 %v1210, 1.442695
    %v1457 = vpow.pop %v1456
    %v1458 = vmul.f32 %v1211, 1.442695
    %v1459 = vpow.pop %v1458
    %v1460 = vmul.f32 %v1212, 1.442695
    %v1461 = vpow.pop %v1460
    %v1462 = vmul.f32 %v1213, 1.442695
    %v1463 = vpow.pop %v1462
    %v1464 = vmul.f32 %v1214, 1.442695
    %v1465 = vpow.pop %v1464
    %v1466 = vmul.f32 %v1215, 1.442695
    %v1467 = vpow.pop %v1466
    %v1468 = vmul.f32 %v1216, 1.442695
    %v1469 = vpow.pop %v1468
    %v1470 = vmul.f32 %v1217, 1.442695
    %v1471 = vpow.pop %v1470
    %v1472 = vmul.f32 %v1218, 1.442695
    %v1473 = vpow.pop %v1472
    %v1474 = vmul.f32 %v1219, 1.442695
    %v1475 = vpow.pop %v1474
    %v1476 = vmul.f32 %v1220, 1.442695
    %v1477 = vpow.pop %v1476
    %v1478 = vmul.f32 %v1221, 1.442695
    %v1479 = vpow.pop %v1478
    %v1480 = vmul.f32 %v1222, 1.442695
    %v1481 = vpow.pop %v1480
    %v1482 = vmul.f32 %v1223, 1.442695
    %v1483 = vpow.pop %v1482
    %v1484 = vmul.f32 %v1224, 1.442695
    %v1485 = vpow.pop %v1484
    %v1486 = vmul.f32 %v1225, 1.442695
    %v1487 = vpow.pop %v1486
    %v1488 = vmul.f32 %v1226, 1.442695
    %v1489 = vpow.pop %v1488
    %v1490 = vmul.f32 %v1227, 1.442695
    %v1491 = vpow.pop %v1490
    %v1492 = vmul.f32 %v1228, 1.442695
    %v1493 = vpow.pop %v1492
    %v1494 = vmul.f32 %v1229, 1.442695
    %v1495 = vpow.pop %v1494
    %v1496 = vmul.f32 %v1230, 1.442695
    %v1497 = vpow.pop %v1496
    %v1498 = vmul.f32 %v1231, 1.442695
    %v1499 = vpow.pop %v1498
    %v1500 = vmul.f32 %v1232, 1.442695
    %v1501 = vpow.pop %v1500
    %v1502 = vmul.f32 %v1233, 1.442695
    %v1503 = vpow.pop %v1502
    %v1504 = vmul.f32 %v1234, 1.442695
    %v1505 = vpow.pop %v1504
    %v1506 = vmul.f32 %v1235, 1.442695
    %v1507 = vpow.pop %v1506
    %v1508 = vmul.f32 %v1236, 1.442695
    %v1509 = vpow.pop %v1508
    %v1510 = vmul.f32 %v1237, 1.442695
    %v1511 = vpow.pop %v1510
    %v1512 = vmul.f32 %v1238, 1.442695
    %v1513 = vpow.pop %v1512
    %v1514 = vmul.f32 %v1239, 1.442695
    %v1515 = vpow.pop %v1514
    %v1516 = vmul.f32 %v1240, 1.442695
    %v1517 = vpow.pop %v1516
    %v1518 = vmul.f32 %v1241, 1.442695
    %v1519 = vpow.pop %v1518
    %v1520 = vmul.f32 %v1242, 1.442695
    %v1521 = vpow.pop %v1520
    %v1522 = vmul.f32 %v1243, 1.442695
    %v1523 = vpow.pop %v1522
    %v1524 = vmul.f32 %v1244, 1.442695
    %v1525 = vpow.pop %v1524
    %v1526 = vmul.f32 %v1245, 1.442695
    %v1527 = vpow.pop %v1526
    %v1528 = vmul.f32 %v1246, 1.442695
    %v1529 = vpow.pop %v1528
    %v1530 = vmul.f32 %v1247, 1.442695
    %v1531 = vpow.pop %v1530
    %v1532 = vmul.f32 %v1248, 1.442695
    %v1533 = vpow.pop %v1532
    %v1534 = vmul.f32 %v1249, 1.442695
    %v1535 = vpow.pop %v1534
    %v1536 = vmul.f32 %v1250, 1.442695
    %v1537 = vpow.pop %v1536
    %v1538 = vmul.f32 %v1251, 1.442695
    %v1539 = vpow.pop %v1538
    %v1540 = vmul.f32 %v1252, 1.442695
    %v1541 = vpow.pop %v1540
    %v1542 = vmul.f32 %v1253, 1.442695
    %v1543 = vpow.pop %v1542
    %v1544 = vmul.f32 %v1254, 1.442695
    %v1545 = vpow.pop %v1544
    %v1546 = vmul.f32 %v1255, 1.442695
    %v1547 = vpow.pop %v1546
    %v1548 = vmul.f32 %v1256, 1.442695
    %v1549 = vpow.pop %v1548
    %v1550 = vmul.f32 %v1257, 1.442695
    %v1551 = vpow.pop %v1550
    %v1552 = vmul.f32 %v1258, 1.442695
    %v1553 = vpow.pop %v1552
    %v1554 = vmul.f32 %v1259, 1.442695
    %v1555 = vpow.pop %v1554
    %v1556 = vmul.f32 %v1260, 1.442695
    %v1557 = vpow.pop %v1556
    %v1558 = vmul.f32 %v1261, 1.442695
    %v1559 = vpow.pop %v1558
    %v1560 = vmul.f32 %v1262, 1.442695
    %v1561 = vpow.pop %v1560
    %v1562 = vmul.f32 %v1263, 1.442695
    %v1563 = vpow.pop %v1562
    %v1564 = vmul.f32 %v1264, 1.442695
    %v1565 = vpow.pop %v1564
    %v1566 = vmul.f32 %v1265, 1.442695
    %v1567 = vpow.pop %v1566
    %v1568 = vmul.f32 %v1266, 1.442695
    %v1569 = vpow.pop %v1568
    %v1570 = vmul.f32 %v1267, 1.442695
    %v1571 = vpow.pop %v1570
    %v1572 = vadd.f32 %v1269, %v1285
    %v1573 = vadd.f32 %v1572, %v1301
    %v1574 = vadd.f32 %v1573, %v1317
    %v1575 = vadd.f32 %v1574, %v1333
    %v1576 = vadd.f32 %v1575, %v1349
    %v1577 = vadd.f32 %v1576, %v1365
    %v1578 = vadd.f32 %v1577, %v1381
    %v1579 = vadd.f32 %v1578, %v1397
    %v1580 = vadd.f32 %v1579, %v1413
    %v1581 = vadd.f32 %v1580, %v1429
    %v1582 = vadd.f32 %v1581, %v1445
    %v1583 = vadd.f32 %v1582, %v1461
    %v1584 = vadd.f32 %v1583, %v1477
    %v1585 = vadd.f32 %v1584, %v1493
    %v1586 = vadd.f32 %v1585, %v1509
    %v1587 = vadd.f32 %v1586, %v1525
    %v1588 = vadd.f32 %v1587, %v1541
    %v1589 = vadd.f32 %v1588, %v1557
    %v1590 = vadd.f32 %v1271, %v1287
    %v1591 = vadd.f32 %v1590, %v1303
    %v1592 = vadd.f32 %v1591, %v1319
    %v1593 = vadd.f32 %v1592, %v1335
    %v1594 = vadd.f32 %v1593, %v1351
    %v1595 = vadd.f32 %v1594, %v1367
    %v1596 = vadd.f32 %v1595, %v1383
    %v1597 = vadd.f32 %v1596, %v1399
    %v1598 = vadd.f32 %v1597, %v1415
    %v1599 = vadd.f32 %v1598, %v1431
    %v1600 = vadd.f32 %v1599, %v1447
    %v1601 = vadd.f32 %v1600, %v1463
    %v1602 = vadd.f32 %v1601, %v1479
    %v1603 = vadd.f32 %v1602, %v1495
    %v1604 = vadd.f32 %v1603, %v1511
    %v1605 = vadd.f32 %v1604, %v1527
    %v1606 = vadd.f32 %v1605, %v1543
    %v1607 = vadd.f32 %v1606, %v1559
    %v1608 = vadd.f32 %v1273, %v1289
    %v1609 = vadd.f32 %v1608, %v1305
    %v1610 = vadd.f32 %v1609, %v1321
    %v1611 = vadd.f32 %v1610, %v1337
    %v1612 = vadd.f32 %v1611, %v1353
    %v1613 = vadd.f32 %v1612, %v1369
    %v1614 = vadd.f32 %v1613, %v1385
    %v1615 = vadd.f32 %v1614, %v1401
    %v1616 = vadd.f32 %v1615, %v1417
    %v1617 = vadd.f32 %v1616, %v1433
    %v1618 = vadd.f32 %v1617, %v1449
    %v1619 = vadd.f32 %v1618, %v1465
    %v1620 = vadd.f32 %v1619, %v1481
    %v1621 = vadd.f32 %v1620, %v1497
    %v1622 = vadd.f32 %v1621, %v1513
    %v1623 = vadd.f32 %v1622, %v1529
    %v1624 = vadd.f32 %v1623, %v1545
    %v1625 = vadd.f32 %v1624, %v1561
    %v1626 = vadd.f32 %v1275, %v1291
    %v1627 = vadd.f32 %v1626, %v1307
    %v1628 = vadd.f32 %v1627, %v1323
    %v1629 = vadd.f32 %v1628, %v1339
    %v1630 = vadd.f32 %v1629, %v1355
    %v1631 = vadd.f32 %v1630, %v1371
    %v1632 = vadd.f32 %v1631, %v1387
    %v1633 = vadd.f32 %v1632, %v1403
    %v1634 = vadd.f32 %v1633, %v1419
    %v1635 = vadd.f32 %v1634, %v1435
    %v1636 = vadd.f32 %v1635, %v1451
    %v1637 = vadd.f32 %v1636, %v1467
    %v1638 = vadd.f32 %v1637, %v1483
    %v1639 = vadd.f32 %v1638, %v1499
    %v1640 = vadd.f32 %v1639, %v1515
    %v1641 = vadd.f32 %v1640, %v1531
    %v1642 = vadd.f32 %v1641, %v1547
    %v1643 = vadd.f32 %v1642, %v1563
    %v1644 = vadd.f32 %v1277, %v1293
    %v1645 = vadd.f32 %v1644, %v1309
    %v1646 = vadd.f32 %v1645, %v1325
    %v1647 = vadd.f32 %v1646, %v1341
    %v1648 = vadd.f32 %v1647, %v1357
    %v1649 = vadd.f32 %v1648, %v1373
    %v1650 = vadd.f32 %v1649, %v1389
    %v1651 = vadd.f32 %v1650, %v1405
    %v1652 = vadd.f32 %v1651, %v1421
    %v1653 = vadd.f32 %v1652, %v1437
    %v1654 = vadd.f32 %v1653, %v1453
    %v1655 = vadd.f32 %v1654, %v1469
    %v1656 = vadd.f32 %v1655, %v1485
    %v1657 = vadd.f32 %v1656, %v1501
    %v1658 = vadd.f32 %v1657, %v1517
    %v1659 = vadd.f32 %v1658, %v1533
    %v1660 = vadd.f32 %v1659, %v1549
    %v1661 = vadd.f32 %v1660, %v1565
    %v1662 = vadd.f32 %v1279, %v1295
    %v1663 = vadd.f32 %v1662, %v1311
    %v1664 = vadd.f32 %v1663, %v1327
    %v1665 = vadd.f32 %v1664, %v1343
    %v1666 = vadd.f32 %v1665, %v1359
    %v1667 = vadd.f32 %v1666, %v1375
    %v1668 = vadd.f32 %v1667, %v1391
    %v1669 = vadd.f32 %v1668, %v1407
    %v1670 = vadd.f32 %v1669, %v1423
    %v1671 = vadd.f32 %v1670, %v1439
    %v1672 = vadd.f32 %v1671, %v1455
    %v1673 = vadd.f32 %v1672, %v1471
    %v1674 = vadd.f32 %v1673, %v1487
    %v1675 = vadd.f32 %v1674, %v1503
    %v1676 = vadd.f32 %v1675, %v1519
    %v1677 = vadd.f32 %v1676, %v1535
    %v1678 = vadd.f32 %v1677, %v1551
    %v1679 = vadd.f32 %v1678, %v1567
    %v1680 = vadd.f32 %v1281, %v1297
    %v1681 = vadd.f32 %v1680, %v1313
    %v1682 = vadd.f32 %v1681, %v1329
    %v1683 = vadd.f32 %v1682, %v1345
    %v1684 = vadd.f32 %v1683, %v1361
    %v1685 = vadd.f32 %v1684, %v1377
    %v1686 = vadd.f32 %v1685, %v1393
    %v1687 = vadd.f32 %v1686, %v1409
    %v1688 = vadd.f32 %v1687, %v1425
    %v1689 = vadd.f32 %v1688, %v1441
    %v1690 = vadd.f32 %v1689, %v1457
    %v1691 = vadd.f32 %v1690, %v1473
    %v1692 = vadd.f32 %v1691, %v1489
    %v1693 = vadd.f32 %v1692, %v1505
    %v1694 = vadd.f32 %v1693, %v1521
    %v1695 = vadd.f32 %v1694, %v1537
    %v1696 = vadd.f32 %v1695, %v1553
    %v1697 = vadd.f32 %v1696, %v1569
    %v1698 = vadd.f32 %v1283, %v1299
    %v1699 = vadd.f32 %v1698, %v1315
    %v1700 = vadd.f32 %v1699, %v1331
    %v1701 = vadd.f32 %v1700, %v1347
    %v1702 = vadd.f32 %v1701, %v1363
    %v1703 = vadd.f32 %v1702, %v1379
    %v1704 = vadd.f32 %v1703, %v1395
    %v1705 = vadd.f32 %v1704, %v1411
    %v1706 = vadd.f32 %v1705, %v1427
    %v1707 = vadd.f32 %v1706, %v1443
    %v1708 = vadd.f32 %v1707, %v1459
    %v1709 = vadd.f32 %v1708, %v1475
    %v1710 = vadd.f32 %v1709, %v1491
    %v1711 = vadd.f32 %v1710, %v1507
    %v1712 = vadd.f32 %v1711, %v1523
    %v1713 = vadd.f32 %v1712, %v1539
    %v1714 = vadd.f32 %v1713, %v1555
    %v1715 = vadd.f32 %v1714, %v1571
    %v1716 = vlog2.pop %v1589
    %v1717 = vmul.f32 %v1716, 0.6931472
    %v1718 = vlog2.pop %v1607
    %v1719 = vmul.f32 %v1718, 0.6931472
    %v1720 = vlog2.pop %v1625
    %v1721 = vmul.f32 %v1720, 0.6931472
    %v1722 = vlog2.pop %v1643
    %v1723 = vmul.f32 %v1722, 0.6931472
    %v1724 = vlog2.pop %v1661
    %v1725 = vmul.f32 %v1724, 0.6931472
    %v1726 = vlog2.pop %v1679
    %v1727 = vmul.f32 %v1726, 0.6931472
    %v1728 = vlog2.pop %v1697
    %v1729 = vmul.f32 %v1728, 0.6931472
    %v1730 = vlog2.pop %v1715
    %v1731 = vmul.f32 %v1730, 0.6931472
    %v1732 = vadd.f32 %v989, %v1717
    %v1733 = vadd.f32 %v1007, %v1719
    %v1734 = vadd.f32 %v1025, %v1721
    %v1735 = vadd.f32 %v1043, %v1723
    %v1736 = vadd.f32 %v1061, %v1725
    %v1737 = vadd.f32 %v1079, %v1727
    %v1738 = vadd.f32 %v1097, %v1729
    %v1739 = vadd.f32 %v1115, %v1731
    %v1740 = vsub.f32 %v1732, %v845
    %v1741 = vsub.f32 %v1733, %v863
    %v1742 = vsub.f32 %v1734, %v881
    %v1743 = vsub.f32 %v1735, %v899
    %v1744 = vsub.f32 %v1736, %v917
    %v1745 = vsub.f32 %v1737, %v935
    %v1746 = vsub.f32 %v1738, %v953
    %v1747 = vsub.f32 %v1739, %v971
    %v1748 = vsub.f32 %v845, %v1732
    %v1749 = vsub.f32 %v863, %v1733
    %v1750 = vsub.f32 %v881, %v1734
    %v1751 = vsub.f32 %v899, %v1735
    %v1752 = vsub.f32 %v917, %v1736
    %v1753 = vsub.f32 %v935, %v1737
    %v1754 = vsub.f32 %v953, %v1738
    %v1755 = vsub.f32 %v971, %v1739
    %v1756 = vmul.f32 %v1748, 1.442695
    %v1757 = vpow.pop %v1756
    %v1758 = vmul.f32 %v1749, 1.442695
    %v1759 = vpow.pop %v1758
    %v1760 = vmul.f32 %v1750, 1.442695
    %v1761 = vpow.pop %v1760
    %v1762 = vmul.f32 %v1751, 1.442695
    %v1763 = vpow.pop %v1762
    %v1764 = vmul.f32 %v1752, 1.442695
    %v1765 = vpow.pop %v1764
    %v1766 = vmul.f32 %v1753, 1.442695
    %v1767 = vpow.pop %v1766
    %v1768 = vmul.f32 %v1754, 1.442695
    %v1769 = vpow.pop %v1768
    %v1770 = vmul.f32 %v1755, 1.442695
    %v1771 = vpow.pop %v1770
    %v1772 = vmin.f32 %v1757, 1.0
    %v1773 = vmin.f32 %v1759, 1.0
    %v1774 = vmin.f32 %v1761, 1.0
    %v1775 = vmin.f32 %v1763, 1.0
    %v1776 = vmin.f32 %v1765, 1.0
    %v1777 = vmin.f32 %v1767, 1.0
    %v1778 = vmin.f32 %v1769, 1.0
    %v1779 = vmin.f32 %v1771, 1.0
    %v1788 = vsel %vm204, %v1772, 2139095040
    %v1789 = vsel %vm205, %v1773, 2139095040
    %v1790 = vsel %vm206, %v1774, 2139095040
    %v1791 = vsel %vm207, %v1775, 2139095040
    %v1792 = vsel %vm208, %v1776, 2139095040
    %v1793 = vsel %vm209, %v1777, 2139095040
    %v1794 = vsel %vm210, %v1778, 2139095040
    %v1795 = vsel %vm211, %v1779, 2139095040
    %1796 = vst [vmem:[#allocation7] sm:$0xff] %v1740
    %1797 = vst [vmem:[#allocation7 + $0x8] sm:$0xff] %v1741
    %1798 = vst [vmem:[#allocation7 + $0x10] sm:$0xff] %v1742
    %1799 = vst [vmem:[#allocation7 + $0x18] sm:$0xff] %v1743
    %1800 = vst [vmem:[#allocation7 + $0x20] sm:$0xff] %v1744
    %1801 = vst [vmem:[#allocation7 + $0x28] sm:$0xff] %v1745
    %1802 = vst [vmem:[#allocation7 + $0x30] sm:$0xff] %v1746
    %1803 = vst [vmem:[#allocation7 + $0x38] sm:$0xff] %v1747
    %1804 = vst [vmem:[#allocation8] sm:$0xff] %v1788
    %1805 = vst [vmem:[#allocation8 + $0x8] sm:$0xff] %v1789
    %1806 = vst [vmem:[#allocation8 + $0x10] sm:$0xff] %v1790
    %1807 = vst [vmem:[#allocation8 + $0x18] sm:$0xff] %v1791
    %1808 = vst [vmem:[#allocation8 + $0x20] sm:$0xff] %v1792
    %1809 = vst [vmem:[#allocation8 + $0x28] sm:$0xff] %v1793
    %1810 = vst [vmem:[#allocation8 + $0x30] sm:$0xff] %v1794
    %1811 = vst [vmem:[#allocation8 + $0x38] sm:$0xff] %v1795
    %vm1812 = vcmp.le.s32.totalorder %v1788, 1058642330
    %vm1813 = vcmp.le.s32.totalorder %v1789, 1058642330
    %vm1814 = vcmp.le.s32.totalorder %v1790, 1058642330
    %vm1815 = vcmp.le.s32.totalorder %v1791, 1058642330
    %vm1816 = vcmp.le.s32.totalorder %v1792, 1058642330
    %vm1817 = vcmp.le.s32.totalorder %v1793, 1058642330
    %vm1818 = vcmp.le.s32.totalorder %v1794, 1058642330
    %vm1819 = vcmp.le.s32.totalorder %v1795, 1058642330
    %v1820 = vsel %vm1812, 1, 0
    %v1821 = vsel %vm1813, 1, 0
    %v1822 = vsel %vm1814, 1, 0
    %v1823 = vsel %vm1815, 1, 0
    %v1824 = vsel %vm1816, 1, 0
    %v1825 = vsel %vm1817, 1, 0
    %v1826 = vsel %vm1818, 1, 0
    %v1827 = vsel %vm1819, 1, 0
    %v1828 = vcvt.s32.f32 %v1820
    %v1829 = vcvt.s32.f32 %v1821
    %v1830 = vcvt.s32.f32 %v1822
    %v1831 = vcvt.s32.f32 %v1823
    %v1832 = vcvt.s32.f32 %v1824
    %v1833 = vcvt.s32.f32 %v1825
    %v1834 = vcvt.s32.f32 %v1826
    %v1835 = vcvt.s32.f32 %v1827
    %v1836 = vsel %vm204, 1, 0
    %v1837 = vsel %vm205, 1, 0
    %v1838 = vsel %vm206, 1, 0
    %v1839 = vsel %vm207, 1, 0
    %v1840 = vsel %vm208, 1, 0
    %v1841 = vsel %vm209, 1, 0
    %v1842 = vsel %vm210, 1, 0
    %v1843 = vsel %vm211, 1, 0
    %v1844 = vcvt.s32.f32 %v1836
    %v1845 = vcvt.s32.f32 %v1837
    %v1846 = vcvt.s32.f32 %v1838
    %v1847 = vcvt.s32.f32 %v1839
    %v1848 = vcvt.s32.f32 %v1840
    %v1849 = vcvt.s32.f32 %v1841
    %v1850 = vcvt.s32.f32 %v1842
    %v1851 = vcvt.s32.f32 %v1843
    %v1852 = vadd.f32 %v1828, %v1832
    %v1853 = vrot.slane %v1852, 4
    %v1854 = vadd.f32 %v1852, %v1853
    %v1855 = vrot.slane %v1854, 2
    %v1856 = vadd.f32 %v1854, %v1855
    %v1857 = vrot.slane %v1856, 1
    %v1858 = vadd.f32 %v1856, %v1857
    %v1859 = vadd.f32 %v1829, %v1833
    %v1860 = vrot.slane %v1859, 4
    %v1861 = vadd.f32 %v1859, %v1860
    %v1862 = vrot.slane %v1861, 2
    %v1863 = vadd.f32 %v1861, %v1862
    %v1864 = vrot.slane %v1863, 1
    %v1865 = vadd.f32 %v1863, %v1864
    %v1866 = vadd.f32 %v1830, %v1834
    %v1867 = vrot.slane %v1866, 4
    %v1868 = vadd.f32 %v1866, %v1867
    %v1869 = vrot.slane %v1868, 2
    %v1870 = vadd.f32 %v1868, %v1869
    %v1871 = vrot.slane %v1870, 1
    %v1872 = vadd.f32 %v1870, %v1871
    %v1873 = vadd.f32 %v1831, %v1835
    %v1874 = vrot.slane %v1873, 4
    %v1875 = vadd.f32 %v1873, %v1874
    %v1876 = vrot.slane %v1875, 2
    %v1877 = vadd.f32 %v1875, %v1876
    %v1878 = vrot.slane %v1877, 1
    %v1879 = vadd.f32 %v1877, %v1878
    %v1884 = vcombine.low %v1858, %v1865
    %v1885 = vcombine.low %v1872, %v1879
    %v1887 = vunpack.c.l.s4 1966171168
    %v1888 = vunpack.c.0.s8 %v1887
    %v1889 = vlaneseq
    %v1890 = vshrl.u32 %v1889, 7
    %v1891 = vsub.s32 %v1888, %v1890
    %v1892 = vrot.slane %v1884, %v1891
    %v1894 = vunpack.c.l.s4 1966171168
    %v1895 = vunpack.c.0.s8 %v1894
    %v1896 = vlaneseq
    %v1897 = vshrl.u32 %v1896, 7
    %v1898 = vsub.s32 %v1895, %v1897
    %v1899 = vrot.slane %v1885, %v1898
    %v1900 = vcombine.low %v1892, %v1899
    %v1902 = vunpack.c.l.s4 1966171168
    %v1903 = vunpack.c.0.s8 %v1902
    %v1904 = vlaneseq
    %v1905 = vshrl.u32 %v1904, 7
    %v1906 = vsub.s32 %v1903, %v1905
    %v1907 = vrot.slane %v1900, %v1906
    %v1909 = vlaneseq
    %vm1910 = vcmp.ge.s32.totalorder %v1909, 0
    %vm1911 = vcmp.lt.s32.totalorder %v1909, 512
    %vm1912 = vmand %vm1910, %vm1911
    %1913 = vst.msk [vmem:[#allocation10] ss:$4 sm:$0xf] %vm1912, %v1907
    %v1914 = vmul.f32 %v1828, %v1740
    %v1915 = vmul.f32 %v1829, %v1741
    %v1916 = vmul.f32 %v1830, %v1742
    %v1917 = vmul.f32 %v1831, %v1743
    %v1918 = vmul.f32 %v1832, %v1744
    %v1919 = vmul.f32 %v1833, %v1745
    %v1920 = vmul.f32 %v1834, %v1746
    %v1921 = vmul.f32 %v1835, %v1747
    %v1922 = vadd.f32 %v1914, %v1918
    %v1923 = vrot.slane %v1922, 4
    %v1924 = vadd.f32 %v1922, %v1923
    %v1925 = vrot.slane %v1924, 2
    %v1926 = vadd.f32 %v1924, %v1925
    %v1927 = vrot.slane %v1926, 1
    %v1928 = vadd.f32 %v1926, %v1927
    %v1929 = vadd.f32 %v1915, %v1919
    %v1930 = vrot.slane %v1929, 4
    %v1931 = vadd.f32 %v1929, %v1930
    %v1932 = vrot.slane %v1931, 2
    %v1933 = vadd.f32 %v1931, %v1932
    %v1934 = vrot.slane %v1933, 1
    %v1935 = vadd.f32 %v1933, %v1934
    %v1936 = vadd.f32 %v1916, %v1920
    %v1937 = vrot.slane %v1936, 4
    %v1938 = vadd.f32 %v1936, %v1937
    %v1939 = vrot.slane %v1938, 2
    %v1940 = vadd.f32 %v1938, %v1939
    %v1941 = vrot.slane %v1940, 1
    %v1942 = vadd.f32 %v1940, %v1941
    %v1943 = vadd.f32 %v1917, %v1921
    %v1944 = vrot.slane %v1943, 4
    %v1945 = vadd.f32 %v1943, %v1944
    %v1946 = vrot.slane %v1945, 2
    %v1947 = vadd.f32 %v1945, %v1946
    %v1948 = vrot.slane %v1947, 1
    %v1949 = vadd.f32 %v1947, %v1948
    %v1954 = vcombine.low %v1928, %v1935
    %v1955 = vcombine.low %v1942, %v1949
    %v1957 = vunpack.c.l.s4 1966171168
    %v1958 = vunpack.c.0.s8 %v1957
    %v1959 = vlaneseq
    %v1960 = vshrl.u32 %v1959, 7
    %v1961 = vsub.s32 %v1958, %v1960
    %v1962 = vrot.slane %v1954, %v1961
    %v1964 = vunpack.c.l.s4 1966171168
    %v1965 = vunpack.c.0.s8 %v1964
    %v1966 = vlaneseq
    %v1967 = vshrl.u32 %v1966, 7
    %v1968 = vsub.s32 %v1965, %v1967
    %v1969 = vrot.slane %v1955, %v1968
    %v1970 = vcombine.low %v1962, %v1969
    %v1972 = vunpack.c.l.s4 1966171168
    %v1973 = vunpack.c.0.s8 %v1972
    %v1974 = vlaneseq
    %v1975 = vshrl.u32 %v1974, 7
    %v1976 = vsub.s32 %v1973, %v1975
    %v1977 = vrot.slane %v1970, %v1976
    %s1979 = scalar_lea.vmem [#allocation10], 1
    %1980 = vst.msk [vmem:[%s1979] ss:$4 sm:$0xf] %vm1912, %v1977
    %v1981 = vadd.f32 %v1844, %v1848
    %v1982 = vrot.slane %v1981, 4
    %v1983 = vadd.f32 %v1981, %v1982
    %v1984 = vrot.slane %v1983, 2
    %v1985 = vadd.f32 %v1983, %v1984
    %v1986 = vrot.slane %v1985, 1
    %v1987 = vadd.f32 %v1985, %v1986
    %v1988 = vadd.f32 %v1845, %v1849
    %v1989 = vrot.slane %v1988, 4
    %v1990 = vadd.f32 %v1988, %v1989
    %v1991 = vrot.slane %v1990, 2
    %v1992 = vadd.f32 %v1990, %v1991
    %v1993 = vrot.slane %v1992, 1
    %v1994 = vadd.f32 %v1992, %v1993
    %v1995 = vadd.f32 %v1846, %v1850
    %v1996 = vrot.slane %v1995, 4
    %v1997 = vadd.f32 %v1995, %v1996
    %v1998 = vrot.slane %v1997, 2
    %v1999 = vadd.f32 %v1997, %v1998
    %v2000 = vrot.slane %v1999, 1
    %v2001 = vadd.f32 %v1999, %v2000
    %v2002 = vadd.f32 %v1847, %v1851
    %v2003 = vrot.slane %v2002, 4
    %v2004 = vadd.f32 %v2002, %v2003
    %v2005 = vrot.slane %v2004, 2
    %v2006 = vadd.f32 %v2004, %v2005
    %v2007 = vrot.slane %v2006, 1
    %v2008 = vadd.f32 %v2006, %v2007
    %v2013 = vcombine.low %v1987, %v1994
    %v2014 = vcombine.low %v2001, %v2008
    %v2016 = vunpack.c.l.s4 1966171168
    %v2017 = vunpack.c.0.s8 %v2016
    %v2018 = vlaneseq
    %v2019 = vshrl.u32 %v2018, 7
    %v2020 = vsub.s32 %v2017, %v2019
    %v2021 = vrot.slane %v2013, %v2020
    %v2023 = vunpack.c.l.s4 1966171168
    %v2024 = vunpack.c.0.s8 %v2023
    %v2025 = vlaneseq
    %v2026 = vshrl.u32 %v2025, 7
    %v2027 = vsub.s32 %v2024, %v2026
    %v2028 = vrot.slane %v2014, %v2027
    %v2029 = vcombine.low %v2021, %v2028
    %v2031 = vunpack.c.l.s4 1966171168
    %v2032 = vunpack.c.0.s8 %v2031
    %v2033 = vlaneseq
    %v2034 = vshrl.u32 %v2033, 7
    %v2035 = vsub.s32 %v2032, %v2034
    %v2036 = vrot.slane %v2029, %v2035
    %s2038 = scalar_lea.vmem [#allocation10], 2
    %2039 = vst.msk [vmem:[%s2038] ss:$4 sm:$0xf] %vm1912, %v2036
    %v2040 = vmul.f32 %v1844, %v1740
    %v2041 = vmul.f32 %v1845, %v1741
    %v2042 = vmul.f32 %v1846, %v1742
    %v2043 = vmul.f32 %v1847, %v1743
    %v2044 = vmul.f32 %v1848, %v1744
    %v2045 = vmul.f32 %v1849, %v1745
    %v2046 = vmul.f32 %v1850, %v1746
    %v2047 = vmul.f32 %v1851, %v1747
    %v2048 = vadd.f32 %v2040, %v2044
    %v2049 = vrot.slane %v2048, 4
    %v2050 = vadd.f32 %v2048, %v2049
    %v2051 = vrot.slane %v2050, 2
    %v2052 = vadd.f32 %v2050, %v2051
    %v2053 = vrot.slane %v2052, 1
    %v2054 = vadd.f32 %v2052, %v2053
    %v2055 = vadd.f32 %v2041, %v2045
    %v2056 = vrot.slane %v2055, 4
    %v2057 = vadd.f32 %v2055, %v2056
    %v2058 = vrot.slane %v2057, 2
    %v2059 = vadd.f32 %v2057, %v2058
    %v2060 = vrot.slane %v2059, 1
    %v2061 = vadd.f32 %v2059, %v2060
    %v2062 = vadd.f32 %v2042, %v2046
    %v2063 = vrot.slane %v2062, 4
    %v2064 = vadd.f32 %v2062, %v2063
    %v2065 = vrot.slane %v2064, 2
    %v2066 = vadd.f32 %v2064, %v2065
    %v2067 = vrot.slane %v2066, 1
    %v2068 = vadd.f32 %v2066, %v2067
    %v2069 = vadd.f32 %v2043, %v2047
    %v2070 = vrot.slane %v2069, 4
    %v2071 = vadd.f32 %v2069, %v2070
    %v2072 = vrot.slane %v2071, 2
    %v2073 = vadd.f32 %v2071, %v2072
    %v2074 = vrot.slane %v2073, 1
    %v2075 = vadd.f32 %v2073, %v2074
    %v2080 = vcombine.low %v2054, %v2061
    %v2081 = vcombine.low %v2068, %v2075
    %v2083 = vunpack.c.l.s4 1966171168
    %v2084 = vunpack.c.0.s8 %v2083
    %v2085 = vlaneseq
    %v2086 = vshrl.u32 %v2085, 7
    %v2087 = vsub.s32 %v2084, %v2086
    %v2088 = vrot.slane %v2080, %v2087
    %v2090 = vunpack.c.l.s4 1966171168
    %v2091 = vunpack.c.0.s8 %v2090
    %v2092 = vlaneseq
    %v2093 = vshrl.u32 %v2092, 7
    %v2094 = vsub.s32 %v2091, %v2093
    %v2095 = vrot.slane %v2081, %v2094
    %v2096 = vcombine.low %v2088, %v2095
    %v2098 = vunpack.c.l.s4 1966171168
    %v2099 = vunpack.c.0.s8 %v2098
    %v2100 = vlaneseq
    %v2101 = vshrl.u32 %v2100, 7
    %v2102 = vsub.s32 %v2099, %v2101
    %v2103 = vrot.slane %v2096, %v2102
    %s2105 = scalar_lea.vmem [#allocation10], 3
    %2106 = vst.msk [vmem:[%s2105] ss:$4 sm:$0xf] %vm1912, %v2103
    // Predicated region
    $region18: #{tpu_custom_call.1} parent=1 // pred_check
      _
    $region19: #{tpu_custom_call.1} parent=1 // pred_check_branch
      %2108 = sbr.rel (0) target = $region21
    $region20: #{tpu_custom_call.1} parent=1 // pred_region
      %s2110 = ssub.s32 1024, 1024
      %2111 = vsyncadd [#allocation4], %s2110
      %s2112 = sshll.u32 [#allocation7], 4
      %s2113 = int_to_ptr.vmem [resolvable:$true] %s2112
      %2118 = dma.vmem_to_hbm [thread:$0]  %s2113, 1024, %s2, [#allocation4], 512, 512, 32
    $region21: #{tpu_custom_call.1} parent=1 // pred_fallthru
      _
    // Predicated region
    $region22: #{tpu_custom_call.1} parent=1 // pred_check
      _
    $region23: #{tpu_custom_call.1} parent=1 // pred_check_branch
      %2120 = sbr.rel (0) target = $region25
    $region24: #{tpu_custom_call.1} parent=1 // pred_region
      %s2122 = ssub.s32 1024, 1024
      %2123 = vsyncadd [#allocation9], %s2122
      %s2124 = sshll.u32 [#allocation8], 4
      %s2125 = int_to_ptr.vmem [resolvable:$true] %s2124
      %2130 = dma.vmem_to_hbm [thread:$0]  %s2125, 1024, %s3, [#allocation9], 512, 512, 32
    $region25: #{tpu_custom_call.1} parent=1 // pred_fallthru
      _
    // Predicated region
    $region26: #{tpu_custom_call.1} parent=1 // pred_check
      _
    $region27: #{tpu_custom_call.1} parent=1 // pred_check_branch
      %2132 = sbr.rel (0) target = $region29
    $region28: #{tpu_custom_call.1} parent=1 // pred_region
      %s2134 = ssub.s32 256, 256
      %2135 = vsyncadd [#allocation9], %s2134
      %s2137 = sshll.u32 [#allocation10], 4
      %s2138 = int_to_ptr.vmem [resolvable:$true] %s2137
      %2140 = dma.vmem_to_hbm [thread:$0]  %s2138, 256, %s4, [#allocation9]
    $region29: #{tpu_custom_call.1} parent=1 // pred_fallthru
      _
    // Predicated region
    $region30: #{tpu_custom_call.1} parent=1 // pred_check
      _
    $region31: #{tpu_custom_call.1} parent=1 // pred_check_branch
      %2142 = sbr.rel (0) target = $region33
    $region32: #{tpu_custom_call.1} parent=1 // pred_region
      %2143 = dma.done [#allocation4], 1024
    $region33: #{tpu_custom_call.1} parent=1 // pred_fallthru
      _
    // Predicated region
    $region34: #{tpu_custom_call.1} parent=1 // pred_check
      _
    $region35: #{tpu_custom_call.1} parent=1 // pred_check_branch
      %2145 = sbr.rel (0) target = $region37
    $region36: #{tpu_custom_call.1} parent=1 // pred_region
      %2146 = dma.done [#allocation9], 1024
    $region37: #{tpu_custom_call.1} parent=1 // pred_fallthru
      _
    // Predicated region
    $region38: #{tpu_custom_call.1} parent=1 // pred_check
      _
    $region39: #{tpu_custom_call.1} parent=1 // pred_check_branch
      %2148 = sbr.rel (0) target = $region41
    $region40: #{tpu_custom_call.1} parent=1 // pred_region
      %2149 = dma.done [#allocation9], 256
    $region41: #{tpu_custom_call.1} parent=1 // pred_fallthru
      _
    %2150 = vsyncpa [#allocation3], 1
    %2151 = vsyncpa [#allocation6], 1
    %2152 = vsyncpa [#allocation4], 1
    %2153 = vsyncpa [#allocation9], 1

</llo_original>
